<compile_context>
chip_gen: v6e
topology: v6e:2x2x1
jax: 0.10.0
libtpu: 0.0.40
codegen_flags: <defaults>
</compile_context>

<pallas_src>
import functools

import jax
import jax.numpy as jnp
from jax.experimental import pallas as pl
from jax.experimental.pallas import tpu as pltpu


LAYER_DIMS = [600, 512, 256, 128, 64, 32]   # in -> ... -> out (rep_dim = 32)
K_PAD = 640                                  # layer-1 contraction padded to 640
OUT_PAD = 128                                # lane-dense output slab width


def _round_up(n, m):
    return ((n + m - 1) // m) * m


def _svdd_kernel(x_ref, w1_ref, w2_ref, w3_ref, w4_ref, w5_ref, o_ref):
    # Fully unrolled 5x (bf16 matmul on MXU + f32 ReLU). Everything in VMEM.
    h = x_ref[...]                                   # (TM, 640) bf16
    acc = None
    for w_ref in (w1_ref, w2_ref, w3_ref, w4_ref, w5_ref):
        w = w_ref[...]                               # read once, bf16
        acc = jnp.dot(h, w, preferred_element_type=jnp.float32)
        acc = jnp.maximum(acc, 0.0)                  # ReLU in f32
        h = acc.astype(jnp.bfloat16)                 # next layer's matmul input
    o_ref[...] = acc.astype(o_ref.dtype)             # last-layer f32 result


def _prepare_weights(weights_f32):
    """Pad layer-1 K (600->640) and layer-5 N (32->128) with zeros, cast bf16."""
    ws = []
    for idx, w in enumerate(weights_f32):
        if idx == 0:
            w = jnp.pad(w, ((0, K_PAD - w.shape[0]), (0, 0)))
        if idx == len(weights_f32) - 1:
            w = jnp.pad(w, ((0, 0), (0, OUT_PAD - w.shape[1])))
        ws.append(w.astype(jnp.bfloat16))
    return tuple(ws)


@functools.partial(jax.jit, static_argnames=("tm",))
def svdd_net(x, weights_f32, *, tm=512):
    """x: (B, 600) f32; weights_f32: list of 5 arrays shaped (in, out) f32."""
    B = x.shape[0]
    out_dim = LAYER_DIMS[-1]

    # Tile the batch; pad B up to a tile multiple (zero rows -> zero outputs).
    TM = min(tm, _round_up(B, 8))
    B_pad = _round_up(B, TM)

    x_p = jnp.pad(x, ((0, B_pad - B), (0, K_PAD - LAYER_DIMS[0])))
    x_p = x_p.astype(jnp.bfloat16)
    ws = _prepare_weights(weights_f32)

    def weight_spec(shape):
        return pl.BlockSpec(shape, lambda i: (0, 0))   # resident across grid

    in_specs = [pl.BlockSpec((TM, K_PAD), lambda i: (i, 0))]
    in_specs += [weight_spec(w.shape) for w in ws]
    out_spec = pl.BlockSpec((TM, OUT_PAD), lambda i: (i, 0))

    out_padded = pl.pallas_call(
        _svdd_kernel,
        out_shape=jax.ShapeDtypeStruct((B_pad, OUT_PAD), jnp.float32),
        grid_spec=pltpu.PrefetchScalarGridSpec(
            num_scalar_prefetch=0,
            grid=(B_pad // TM,),
            in_specs=in_specs,
            out_specs=out_spec,
        ),
        compiler_params=pltpu.CompilerParams(
            dimension_semantics=("parallel",),
        ),
    )(x_p, *ws)

    return out_padded[:B, :out_dim]


def init_weights(key):
    """PyTorch-style init U(-1/sqrt(fan_in), 1/sqrt(fan_in)), stored (in, out)."""
    weights = []
    for i in range(len(LAYER_DIMS) - 1):
        fan_in, fan_out = LAYER_DIMS[i], LAYER_DIMS[i + 1]
        key, sub = jax.random.split(key)
        bound = 1.0 / (fan_in ** 0.5)
        w = jax.random.uniform(
            sub, (fan_in, fan_out), dtype=jnp.float32, minval=-bound, maxval=bound
        )
        weights.append(w)
    return weights


def reference_forward_f32(x, weights):
    h = x
    for w in weights:
        h = jnp.maximum(h @ w, 0.0)
    return h


def reference_forward_bf16(x, weights):
    """Mirror of the kernel's numerics: bf16 matmul inputs, f32 accum/ReLU."""
    h = x.astype(jnp.bfloat16)
    acc = None
    for w in weights:
        acc = jnp.dot(h, w.astype(jnp.bfloat16),
                      preferred_element_type=jnp.float32)
        acc = jnp.maximum(acc, 0.0)
        h = acc.astype(jnp.bfloat16)
    return acc


if __name__ == "__main__":
    key = jax.random.PRNGKey(0)
    k_x, k_w = jax.random.split(key)

    B = 8
    x = jax.random.normal(k_x, (B, LAYER_DIMS[0]), dtype=jnp.float32)
    weights = init_weights(k_w)

    out = svdd_net(x, weights)
    out = jax.block_until_ready(out)
    assert out.shape == (B, LAYER_DIMS[-1])

    # Tight check against a reference that mirrors the kernel's bf16/f32 math.
    ref_bf16 = reference_forward_bf16(x, weights)
    assert jnp.allclose(out, ref_bf16, atol=2e-3, rtol=2e-3)

    # Loose semantic check against the pure-f32 PyTorch-equivalent forward.
    ref_f32 = reference_forward_f32(x, weights)
    assert jnp.allclose(out, ref_f32, atol=5e-2, rtol=5e-2)

    print("KERNEL_OK")
</pallas_src>

<mosaic_0001>
module attributes {stable_mosaic.version = 11 : i64} {
  func.func @_svdd_kernel(%arg0: i32, %arg1: memref<8x640xbf16, #tpu.memory_space<vmem>>, %arg2: memref<640x512xbf16, #tpu.memory_space<vmem>>, %arg3: memref<512x256xbf16, #tpu.memory_space<vmem>>, %arg4: memref<256x128xbf16, #tpu.memory_space<vmem>>, %arg5: memref<128x64xbf16, #tpu.memory_space<vmem>>, %arg6: memref<64x128xbf16, #tpu.memory_space<vmem>>, %arg7: memref<8x128xf32, #tpu.memory_space<vmem>>) attributes {dimension_semantics = [#tpu.dimension_semantics<parallel>], iteration_bounds = array<i64: 1>, scalar_prefetch = 0 : i64, scratch_operands = 0 : i64, tpu.core_type = #tpu.core_type<tc>, window_params = [{transform_indices = @transform_0, window_bounds = array<i64: 8, 640>}, {pipeline_mode = #tpu.pipeline_mode<synchronous>, transform_indices = @transform_1, window_bounds = array<i64: 640, 512>}, {pipeline_mode = #tpu.pipeline_mode<synchronous>, transform_indices = @transform_2, window_bounds = array<i64: 512, 256>}, {pipeline_mode = #tpu.pipeline_mode<synchronous>, transform_indices = @transform_3, window_bounds = array<i64: 256, 128>}, {pipeline_mode = #tpu.pipeline_mode<synchronous>, transform_indices = @transform_4, window_bounds = array<i64: 128, 64>}, {pipeline_mode = #tpu.pipeline_mode<synchronous>, transform_indices = @transform_5, window_bounds = array<i64: 64, 128>}, {transform_indices = @transform_6, window_bounds = array<i64: 8, 128>}]} {
    %c0 = arith.constant 0 : index
    %c0_0 = arith.constant 0 : index
    %0 = vector.load %arg1[%c0, %c0_0] : memref<8x640xbf16, #tpu.memory_space<vmem>>, vector<8x640xbf16>
    %c0_1 = arith.constant 0 : index
    %c0_2 = arith.constant 0 : index
    %1 = vector.load %arg2[%c0_1, %c0_2] : memref<640x512xbf16, #tpu.memory_space<vmem>>, vector<640x512xbf16>
    %cst = arith.constant dense<0.000000e+00> : vector<8x512xf32>
    %2 = tpu.matmul %0, %1, %cst {dimension_numbers = #tpu.dot_dimension_numbers<[1], [0], [0], [1], [0, 0, 1, 1], [], []>} : vector<8x640xbf16>, vector<640x512xbf16>, vector<8x512xf32> -> vector<8x512xf32>
    %cst_3 = arith.constant 0.000000e+00 : f32
    %3 = vector.broadcast %cst_3 : f32 to vector<8x512xf32>
    %4 = arith.maximumf %2, %3 : vector<8x512xf32>
    %5 = arith.truncf %4 : vector<8x512xf32> to vector<8x512xbf16>
    %c0_4 = arith.constant 0 : index
    %c0_5 = arith.constant 0 : index
    %6 = vector.load %arg3[%c0_4, %c0_5] : memref<512x256xbf16, #tpu.memory_space<vmem>>, vector<512x256xbf16>
    %cst_6 = arith.constant dense<0.000000e+00> : vector<8x256xf32>
    %7 = tpu.matmul %5, %6, %cst_6 {dimension_numbers = #tpu.dot_dimension_numbers<[1], [0], [0], [1], [0, 0, 1, 1], [], []>} : vector<8x512xbf16>, vector<512x256xbf16>, vector<8x256xf32> -> vector<8x256xf32>
    %cst_7 = arith.constant 0.000000e+00 : f32
    %8 = vector.broadcast %cst_7 : f32 to vector<8x256xf32>
    %9 = arith.maximumf %7, %8 : vector<8x256xf32>
    %10 = arith.truncf %9 : vector<8x256xf32> to vector<8x256xbf16>
    %c0_8 = arith.constant 0 : index
    %c0_9 = arith.constant 0 : index
    %11 = vector.load %arg4[%c0_8, %c0_9] : memref<256x128xbf16, #tpu.memory_space<vmem>>, vector<256x128xbf16>
    %cst_10 = arith.constant dense<0.000000e+00> : vector<8x128xf32>
    %12 = tpu.matmul %10, %11, %cst_10 {dimension_numbers = #tpu.dot_dimension_numbers<[1], [0], [0], [1], [0, 0, 1, 1], [], []>} : vector<8x256xbf16>, vector<256x128xbf16>, vector<8x128xf32> -> vector<8x128xf32>
    %cst_11 = arith.constant 0.000000e+00 : f32
    %13 = vector.broadcast %cst_11 : f32 to vector<8x128xf32>
    %14 = arith.maximumf %12, %13 : vector<8x128xf32>
    %15 = arith.truncf %14 : vector<8x128xf32> to vector<8x128xbf16>
    %c0_12 = arith.constant 0 : index
    %c0_13 = arith.constant 0 : index
    %16 = vector.load %arg5[%c0_12, %c0_13] : memref<128x64xbf16, #tpu.memory_space<vmem>>, vector<128x64xbf16>
    %cst_14 = arith.constant dense<0.000000e+00> : vector<8x64xf32>
    %17 = tpu.matmul %15, %16, %cst_14 {dimension_numbers = #tpu.dot_dimension_numbers<[1], [0], [0], [1], [0, 0, 1, 1], [], []>} : vector<8x128xbf16>, vector<128x64xbf16>, vector<8x64xf32> -> vector<8x64xf32>
    %cst_15 = arith.constant 0.000000e+00 : f32
    %18 = vector.broadcast %cst_15 : f32 to vector<8x64xf32>
    %19 = arith.maximumf %17, %18 : vector<8x64xf32>
    %20 = arith.truncf %19 : vector<8x64xf32> to vector<8x64xbf16>
    %c0_16 = arith.constant 0 : index
    %c0_17 = arith.constant 0 : index
    %21 = vector.load %arg6[%c0_16, %c0_17] : memref<64x128xbf16, #tpu.memory_space<vmem>>, vector<64x128xbf16>
    %cst_18 = arith.constant dense<0.000000e+00> : vector<8x128xf32>
    %22 = tpu.matmul %20, %21, %cst_18 {dimension_numbers = #tpu.dot_dimension_numbers<[1], [0], [0], [1], [0, 0, 1, 1], [], []>} : vector<8x64xbf16>, vector<64x128xbf16>, vector<8x128xf32> -> vector<8x128xf32>
    %cst_19 = arith.constant 0.000000e+00 : f32
    %23 = vector.broadcast %cst_19 : f32 to vector<8x128xf32>
    %24 = arith.maximumf %22, %23 : vector<8x128xf32>
    %c0_20 = arith.constant 0 : index
    %c0_21 = arith.constant 0 : index
    %25 = vector.load %arg7[%c0_20, %c0_21] : memref<8x128xf32, #tpu.memory_space<vmem>>, vector<8x128xf32>
    tpu.vector_store %arg7[%c0_20, %c0_21], %24 {strides = array<i32>} : memref<8x128xf32, #tpu.memory_space<vmem>>, vector<8x128xf32>,
    return
  }
  func.func @transform_0(%arg0: i32) -> (i32, i32) {
    %c0_i32 = arith.constant 0 : i32
    %c0_i32_0 = arith.constant 0 : i32
    return %arg0, %c0_i32 : i32, i32
  }
  func.func @transform_1(%arg0: i32) -> (i32, i32) {
    %c0_i32 = arith.constant 0 : i32
    %c0_i32_0 = arith.constant 0 : i32
    %c0_i32_1 = arith.constant 0 : i32
    return %c0_i32, %c0_i32_0 : i32, i32
  }
  func.func @transform_2(%arg0: i32) -> (i32, i32) {
    %c0_i32 = arith.constant 0 : i32
    %c0_i32_0 = arith.constant 0 : i32
    %c0_i32_1 = arith.constant 0 : i32
    return %c0_i32, %c0_i32_0 : i32, i32
  }
  func.func @transform_3(%arg0: i32) -> (i32, i32) {
    %c0_i32 = arith.constant 0 : i32
    %c0_i32_0 = arith.constant 0 : i32
    %c0_i32_1 = arith.constant 0 : i32
    return %c0_i32, %c0_i32_0 : i32, i32
  }
  func.func @transform_4(%arg0: i32) -> (i32, i32) {
    %c0_i32 = arith.constant 0 : i32
    %c0_i32_0 = arith.constant 0 : i32
    %c0_i32_1 = arith.constant 0 : i32
    return %c0_i32, %c0_i32_0 : i32, i32
  }
  func.func @transform_5(%arg0: i32) -> (i32, i32) {
    %c0_i32 = arith.constant 0 : i32
    %c0_i32_0 = arith.constant 0 : i32
    %c0_i32_1 = arith.constant 0 : i32
    return %c0_i32, %c0_i32_0 : i32, i32
  }
  func.func @transform_6(%arg0: i32) -> (i32, i32) {
    %c0_i32 = arith.constant 0 : i32
    %c0_i32_0 = arith.constant 0 : i32
    return %arg0, %c0_i32 : i32, i32
  }
}

</mosaic_0001>

<llo_original>
// kernel: svdd_net.1
$region0: #{svdd_net.1}
  #allocation0 [shape = 'u32[]', space=smem, size = 0x4, offset = 0x4, fixed_abs, tag = 'smem constant byte address 0x4 - core index']
  #allocation1 [shape = 'u32[144,128]{1,0:T(1,128)}', space=vmem, size = 0x12000, scoped, tag = 'internal scratch']
  %s0 = inlined_call_operand.vmem [shape: bf16[8,640], index: 0, kind: input, shape index: {}]
  %s1 = inlined_call_operand.vmem [shape: bf16[640,512], index: 1, kind: input, shape index: {}]
  %s2 = inlined_call_operand.vmem [shape: bf16[512,256], index: 2, kind: input, shape index: {}]
  %s3 = inlined_call_operand.vmem [shape: bf16[256,128], index: 3, kind: input, shape index: {}]
  %s4 = inlined_call_operand.vmem [shape: bf16[128,64], index: 4, kind: input, shape index: {}]
  %s5 = inlined_call_operand.vmem [shape: bf16[64,128], index: 5, kind: input, shape index: {}]
  %s6 = inlined_call_operand.hbm [shape: f32[8,128], index: 6, kind: output, shape index: {}]
  %s7 = sld [smem:[#allocation0]]
  $region34: #{svdd_net.1} parent=0
    _
  %s9 = ssub.s32 1, %s7
  %s10 = scalar_select 0, %s9, %s7
  $region1: #{svdd_net.1} parent=0
    #allocation2 [shape = 'u8[4096]{0}', space=vmem, size = 0x1000, scoped, tag = 'output window, operand 0, single buffered']
    #allocation3 [shape = 's32[1]{0}', space=sflag, size = 0x4, scoped, tag = 'scoped memory for svdd_net.1']
    %11 = vsyncpa [#allocation3], 0
    // Predicated region
    $region2: #{svdd_net.1} parent=1 // pred_check
      _
    $region3: #{svdd_net.1} parent=1 // pred_check_branch
      %13 = sbr.rel (0) target = $region5
    $region4: #{svdd_net.1} parent=1 // pred_region
      _
    $region5: #{svdd_net.1} parent=1 // pred_fallthru
      _
    // Predicated region
    $region6: #{svdd_net.1} parent=1 // pred_check
      _
    $region7: #{svdd_net.1} parent=1 // pred_check_branch
      %15 = sbr.rel (0) target = $region9
    $region8: #{svdd_net.1} parent=1 // pred_region
      _
    $region9: #{svdd_net.1} parent=1 // pred_fallthru
      _
    // Predicated region
    $region10: #{svdd_net.1} parent=1 // pred_check
      _
    $region11: #{svdd_net.1} parent=1 // pred_check_branch
      %17 = sbr.rel (0) target = $region13
    $region12: #{svdd_net.1} parent=1 // pred_region
      _
    $region13: #{svdd_net.1} parent=1 // pred_fallthru
      _
    // Predicated region
    $region14: #{svdd_net.1} parent=1 // pred_check
      _
    $region15: #{svdd_net.1} parent=1 // pred_check_branch
      %19 = sbr.rel (0) target = $region17
    $region16: #{svdd_net.1} parent=1 // pred_region
      _
    $region17: #{svdd_net.1} parent=1 // pred_fallthru
      _
    // Predicated region
    $region18: #{svdd_net.1} parent=1 // pred_check
      _
    $region19: #{svdd_net.1} parent=1 // pred_check_branch
      %21 = sbr.rel (0) target = $region21
    $region20: #{svdd_net.1} parent=1 // pred_region
      _
    $region21: #{svdd_net.1} parent=1 // pred_fallthru
      _
    // Predicated region
    $region22: #{svdd_net.1} parent=1 // pred_check
      _
    $region23: #{svdd_net.1} parent=1 // pred_check_branch
      %23 = sbr.rel (0) target = $region25
    $region24: #{svdd_net.1} parent=1 // pred_region
      _
    $region25: #{svdd_net.1} parent=1 // pred_fallthru
      _
    %v25 = vld [vmem:[%s0] sm:$0xff]
    %v26 = vld [vmem:[%s0 + $0x8] sm:$0xff]
    %v27 = vld [vmem:[%s0 + $0x10] sm:$0xf]
    %v28 = vld [vmem:[%s1] sm:$0xff]
    %v29 = vld [vmem:[%s1 + $0x8] sm:$0xff]
    %v30 = vld [vmem:[%s1 + $0x10] sm:$0xff]
    %v31 = vld [vmem:[%s1 + $0x18] sm:$0xff]
    %v32 = vld [vmem:[%s1 + $0x20] sm:$0xff]
    %v33 = vld [vmem:[%s1 + $0x28] sm:$0xff]
    %v34 = vld [vmem:[%s1 + $0x30] sm:$0xff]
    %v35 = vld [vmem:[%s1 + $0x38] sm:$0xff]
    %v36 = vld [vmem:[%s1 + $0x40] sm:$0xff]
    %v37 = vld [vmem:[%s1 + $0x48] sm:$0xff]
    %v38 = vld [vmem:[%s1 + $0x50] sm:$0xff]
    %v39 = vld [vmem:[%s1 + $0x58] sm:$0xff]
    %v40 = vld [vmem:[%s1 + $0x60] sm:$0xff]
    %v41 = vld [vmem:[%s1 + $0x68] sm:$0xff]
    %v42 = vld [vmem:[%s1 + $0x70] sm:$0xff]
    %v43 = vld [vmem:[%s1 + $0x78] sm:$0xff]
    %v44 = vld [vmem:[%s1 + $0x80] sm:$0xff]
    %v45 = vld [vmem:[%s1 + $0x88] sm:$0xff]
    %v46 = vld [vmem:[%s1 + $0x90] sm:$0xff]
    %v47 = vld [vmem:[%s1 + $0x98] sm:$0xff]
    %v48 = vld [vmem:[%s1 + $0xa0] sm:$0xff]
    %v49 = vld [vmem:[%s1 + $0xa8] sm:$0xff]
    %v50 = vld [vmem:[%s1 + $0xb0] sm:$0xff]
    %v51 = vld [vmem:[%s1 + $0xb8] sm:$0xff]
    %v52 = vld [vmem:[%s1 + $0xc0] sm:$0xff]
    %v53 = vld [vmem:[%s1 + $0xc8] sm:$0xff]
    %v54 = vld [vmem:[%s1 + $0xd0] sm:$0xff]
    %v55 = vld [vmem:[%s1 + $0xd8] sm:$0xff]
    %v56 = vld [vmem:[%s1 + $0xe0] sm:$0xff]
    %v57 = vld [vmem:[%s1 + $0xe8] sm:$0xff]
    %v58 = vld [vmem:[%s1 + $0xf0] sm:$0xff]
    %v59 = vld [vmem:[%s1 + $0xf8] sm:$0xff]
    %v60 = vld [vmem:[%s1 + $0x100] sm:$0xff]
    %v61 = vld [vmem:[%s1 + $0x108] sm:$0xff]
    %v62 = vld [vmem:[%s1 + $0x110] sm:$0xff]
    %v63 = vld [vmem:[%s1 + $0x118] sm:$0xff]
    %v64 = vld [vmem:[%s1 + $0x120] sm:$0xff]
    %v65 = vld [vmem:[%s1 + $0x128] sm:$0xff]
    %v66 = vld [vmem:[%s1 + $0x130] sm:$0xff]
    %v67 = vld [vmem:[%s1 + $0x138] sm:$0xff]
    %v68 = vld [vmem:[%s1 + $0x140] sm:$0xff]
    %v69 = vld [vmem:[%s1 + $0x148] sm:$0xff]
    %v70 = vld [vmem:[%s1 + $0x150] sm:$0xff]
    %v71 = vld [vmem:[%s1 + $0x158] sm:$0xff]
    %v72 = vld [vmem:[%s1 + $0x160] sm:$0xff]
    %v73 = vld [vmem:[%s1 + $0x168] sm:$0xff]
    %v74 = vld [vmem:[%s1 + $0x170] sm:$0xff]
    %v75 = vld [vmem:[%s1 + $0x178] sm:$0xff]
    %v76 = vld [vmem:[%s1 + $0x180] sm:$0xff]
    %v77 = vld [vmem:[%s1 + $0x188] sm:$0xff]
    %v78 = vld [vmem:[%s1 + $0x190] sm:$0xff]
    %v79 = vld [vmem:[%s1 + $0x198] sm:$0xff]
    %v80 = vld [vmem:[%s1 + $0x1a0] sm:$0xff]
    %v81 = vld [vmem:[%s1 + $0x1a8] sm:$0xff]
    %v82 = vld [vmem:[%s1 + $0x1b0] sm:$0xff]
    %v83 = vld [vmem:[%s1 + $0x1b8] sm:$0xff]
    %v84 = vld [vmem:[%s1 + $0x1c0] sm:$0xff]
    %v85 = vld [vmem:[%s1 + $0x1c8] sm:$0xff]
    %v86 = vld [vmem:[%s1 + $0x1d0] sm:$0xff]
    %v87 = vld [vmem:[%s1 + $0x1d8] sm:$0xff]
    %v88 = vld [vmem:[%s1 + $0x1e0] sm:$0xff]
    %v89 = vld [vmem:[%s1 + $0x1e8] sm:$0xff]
    %v90 = vld [vmem:[%s1 + $0x1f0] sm:$0xff]
    %v91 = vld [vmem:[%s1 + $0x1f8] sm:$0xff]
    %v92 = vld [vmem:[%s1 + $0x200] sm:$0xff]
    %v93 = vld [vmem:[%s1 + $0x208] sm:$0xff]
    %v94 = vld [vmem:[%s1 + $0x210] sm:$0xff]
    %v95 = vld [vmem:[%s1 + $0x218] sm:$0xff]
    %v96 = vld [vmem:[%s1 + $0x220] sm:$0xff]
    %v97 = vld [vmem:[%s1 + $0x228] sm:$0xff]
    %v98 = vld [vmem:[%s1 + $0x230] sm:$0xff]
    %v99 = vld [vmem:[%s1 + $0x238] sm:$0xff]
    %v100 = vld [vmem:[%s1 + $0x240] sm:$0xff]
    %v101 = vld [vmem:[%s1 + $0x248] sm:$0xff]
    %v102 = vld [vmem:[%s1 + $0x250] sm:$0xff]
    %v103 = vld [vmem:[%s1 + $0x258] sm:$0xff]
    %v104 = vld [vmem:[%s1 + $0x260] sm:$0xff]
    %v105 = vld [vmem:[%s1 + $0x268] sm:$0xff]
    %v106 = vld [vmem:[%s1 + $0x270] sm:$0xff]
    %v107 = vld [vmem:[%s1 + $0x278] sm:$0xff]
    %v108 = vld [vmem:[%s1 + $0x280] sm:$0xff]
    %v109 = vld [vmem:[%s1 + $0x288] sm:$0xff]
    %v110 = vld [vmem:[%s1 + $0x290] sm:$0xff]
    %v111 = vld [vmem:[%s1 + $0x298] sm:$0xff]
    %v112 = vld [vmem:[%s1 + $0x2a0] sm:$0xff]
    %v113 = vld [vmem:[%s1 + $0x2a8] sm:$0xff]
    %v114 = vld [vmem:[%s1 + $0x2b0] sm:$0xff]
    %v115 = vld [vmem:[%s1 + $0x2b8] sm:$0xff]
    %v116 = vld [vmem:[%s1 + $0x2c0] sm:$0xff]
    %v117 = vld [vmem:[%s1 + $0x2c8] sm:$0xff]
    %v118 = vld [vmem:[%s1 + $0x2d0] sm:$0xff]
    %v119 = vld [vmem:[%s1 + $0x2d8] sm:$0xff]
    %v120 = vld [vmem:[%s1 + $0x2e0] sm:$0xff]
    %v121 = vld [vmem:[%s1 + $0x2e8] sm:$0xff]
    %v122 = vld [vmem:[%s1 + $0x2f0] sm:$0xff]
    %v123 = vld [vmem:[%s1 + $0x2f8] sm:$0xff]
    %v124 = vld [vmem:[%s1 + $0x300] sm:$0xff]
    %v125 = vld [vmem:[%s1 + $0x308] sm:$0xff]
    %v126 = vld [vmem:[%s1 + $0x310] sm:$0xff]
    %v127 = vld [vmem:[%s1 + $0x318] sm:$0xff]
    %v128 = vld [vmem:[%s1 + $0x320] sm:$0xff]
    %v129 = vld [vmem:[%s1 + $0x328] sm:$0xff]
    %v130 = vld [vmem:[%s1 + $0x330] sm:$0xff]
    %v131 = vld [vmem:[%s1 + $0x338] sm:$0xff]
    %v132 = vld [vmem:[%s1 + $0x340] sm:$0xff]
    %v133 = vld [vmem:[%s1 + $0x348] sm:$0xff]
    %v134 = vld [vmem:[%s1 + $0x350] sm:$0xff]
    %v135 = vld [vmem:[%s1 + $0x358] sm:$0xff]
    %v136 = vld [vmem:[%s1 + $0x360] sm:$0xff]
    %v137 = vld [vmem:[%s1 + $0x368] sm:$0xff]
    %v138 = vld [vmem:[%s1 + $0x370] sm:$0xff]
    %v139 = vld [vmem:[%s1 + $0x378] sm:$0xff]
    %v140 = vld [vmem:[%s1 + $0x380] sm:$0xff]
    %v141 = vld [vmem:[%s1 + $0x388] sm:$0xff]
    %v142 = vld [vmem:[%s1 + $0x390] sm:$0xff]
    %v143 = vld [vmem:[%s1 + $0x398] sm:$0xff]
    %v144 = vld [vmem:[%s1 + $0x3a0] sm:$0xff]
    %v145 = vld [vmem:[%s1 + $0x3a8] sm:$0xff]
    %v146 = vld [vmem:[%s1 + $0x3b0] sm:$0xff]
    %v147 = vld [vmem:[%s1 + $0x3b8] sm:$0xff]
    %v148 = vld [vmem:[%s1 + $0x3c0] sm:$0xff]
    %v149 = vld [vmem:[%s1 + $0x3c8] sm:$0xff]
    %v150 = vld [vmem:[%s1 + $0x3d0] sm:$0xff]
    %v151 = vld [vmem:[%s1 + $0x3d8] sm:$0xff]
    %v152 = vld [vmem:[%s1 + $0x3e0] sm:$0xff]
    %v153 = vld [vmem:[%s1 + $0x3e8] sm:$0xff]
    %v154 = vld [vmem:[%s1 + $0x3f0] sm:$0xff]
    %v155 = vld [vmem:[%s1 + $0x3f8] sm:$0xff]
    %v156 = vld [vmem:[%s1 + $0x400] sm:$0xff]
    %v157 = vld [vmem:[%s1 + $0x408] sm:$0xff]
    %v158 = vld [vmem:[%s1 + $0x410] sm:$0xff]
    %v159 = vld [vmem:[%s1 + $0x418] sm:$0xff]
    %v160 = vld [vmem:[%s1 + $0x420] sm:$0xff]
    %v161 = vld [vmem:[%s1 + $0x428] sm:$0xff]
    %v162 = vld [vmem:[%s1 + $0x430] sm:$0xff]
    %v163 = vld [vmem:[%s1 + $0x438] sm:$0xff]
    %v164 = vld [vmem:[%s1 + $0x440] sm:$0xff]
    %v165 = vld [vmem:[%s1 + $0x448] sm:$0xff]
    %v166 = vld [vmem:[%s1 + $0x450] sm:$0xff]
    %v167 = vld [vmem:[%s1 + $0x458] sm:$0xff]
    %v168 = vld [vmem:[%s1 + $0x460] sm:$0xff]
    %v169 = vld [vmem:[%s1 + $0x468] sm:$0xff]
    %v170 = vld [vmem:[%s1 + $0x470] sm:$0xff]
    %v171 = vld [vmem:[%s1 + $0x478] sm:$0xff]
    %v172 = vld [vmem:[%s1 + $0x480] sm:$0xff]
    %v173 = vld [vmem:[%s1 + $0x488] sm:$0xff]
    %v174 = vld [vmem:[%s1 + $0x490] sm:$0xff]
    %v175 = vld [vmem:[%s1 + $0x498] sm:$0xff]
    %v176 = vld [vmem:[%s1 + $0x4a0] sm:$0xff]
    %v177 = vld [vmem:[%s1 + $0x4a8] sm:$0xff]
    %v178 = vld [vmem:[%s1 + $0x4b0] sm:$0xff]
    %v179 = vld [vmem:[%s1 + $0x4b8] sm:$0xff]
    %v180 = vld [vmem:[%s1 + $0x4c0] sm:$0xff]
    %v181 = vld [vmem:[%s1 + $0x4c8] sm:$0xff]
    %v182 = vld [vmem:[%s1 + $0x4d0] sm:$0xff]
    %v183 = vld [vmem:[%s1 + $0x4d8] sm:$0xff]
    %v184 = vld [vmem:[%s1 + $0x4e0] sm:$0xff]
    %v185 = vld [vmem:[%s1 + $0x4e8] sm:$0xff]
    %v186 = vld [vmem:[%s1 + $0x4f0] sm:$0xff]
    %v187 = vld [vmem:[%s1 + $0x4f8] sm:$0xff]
    %v191 = vunpack.c.l.b16 %v25
    %v192 = vunpack.c.h.b16 %v25
    %v193 = vunpack.c.l.b16 %v26
    %v194 = vunpack.c.h.b16 %v26
    %v195 = vunpack.c.l.b16 %v27
    %v196 = vpack.c.b16 %v191, %v191
    %v197 = vpack.c.b16 %v192, %v192
    %v198 = vpack.c.b16 %v193, %v193
    %v199 = vpack.c.b16 %v194, %v194
    %v200 = vpack.c.b16 %v195, %v195
    %v366 = vunpack.c.l.b16 %v28
    %v367 = vunpack.c.h.b16 %v28
    %v368 = vunpack.c.l.b16 %v29
    %v369 = vunpack.c.h.b16 %v29
    %v370 = vunpack.c.l.b16 %v30
    %v371 = vunpack.c.h.b16 %v30
    %v372 = vunpack.c.l.b16 %v31
    %v373 = vunpack.c.h.b16 %v31
    %v374 = vunpack.c.l.b16 %v32
    %v375 = vunpack.c.h.b16 %v32
    %v376 = vunpack.c.l.b16 %v33
    %v377 = vunpack.c.h.b16 %v33
    %v378 = vunpack.c.l.b16 %v34
    %v379 = vunpack.c.h.b16 %v34
    %v380 = vunpack.c.l.b16 %v35
    %v381 = vunpack.c.h.b16 %v35
    %v382 = vunpack.c.l.b16 %v36
    %v383 = vunpack.c.h.b16 %v36
    %v384 = vunpack.c.l.b16 %v37
    %v385 = vunpack.c.h.b16 %v37
    %v386 = vunpack.c.l.b16 %v38
    %v387 = vunpack.c.h.b16 %v38
    %v388 = vunpack.c.l.b16 %v39
    %v389 = vunpack.c.h.b16 %v39
    %v390 = vunpack.c.l.b16 %v40
    %v391 = vunpack.c.h.b16 %v40
    %v392 = vunpack.c.l.b16 %v41
    %v393 = vunpack.c.h.b16 %v41
    %v394 = vunpack.c.l.b16 %v42
    %v395 = vunpack.c.h.b16 %v42
    %v396 = vunpack.c.l.b16 %v43
    %v397 = vunpack.c.h.b16 %v43
    %v398 = vunpack.c.l.b16 %v44
    %v399 = vunpack.c.h.b16 %v44
    %v400 = vunpack.c.l.b16 %v45
    %v401 = vunpack.c.h.b16 %v45
    %v402 = vunpack.c.l.b16 %v46
    %v403 = vunpack.c.h.b16 %v46
    %v404 = vunpack.c.l.b16 %v47
    %v405 = vunpack.c.h.b16 %v47
    %v406 = vunpack.c.l.b16 %v48
    %v407 = vunpack.c.h.b16 %v48
    %v408 = vunpack.c.l.b16 %v49
    %v409 = vunpack.c.h.b16 %v49
    %v410 = vunpack.c.l.b16 %v50
    %v411 = vunpack.c.h.b16 %v50
    %v412 = vunpack.c.l.b16 %v51
    %v413 = vunpack.c.h.b16 %v51
    %v414 = vunpack.c.l.b16 %v52
    %v415 = vunpack.c.h.b16 %v52
    %v416 = vunpack.c.l.b16 %v53
    %v417 = vunpack.c.h.b16 %v53
    %v418 = vunpack.c.l.b16 %v54
    %v419 = vunpack.c.h.b16 %v54
    %v420 = vunpack.c.l.b16 %v55
    %v421 = vunpack.c.h.b16 %v55
    %v422 = vunpack.c.l.b16 %v56
    %v423 = vunpack.c.h.b16 %v56
    %v424 = vunpack.c.l.b16 %v57
    %v425 = vunpack.c.h.b16 %v57
    %v426 = vunpack.c.l.b16 %v58
    %v427 = vunpack.c.h.b16 %v58
    %v428 = vunpack.c.l.b16 %v59
    %v429 = vunpack.c.h.b16 %v59
    %v430 = vunpack.c.l.b16 %v60
    %v431 = vunpack.c.h.b16 %v60
    %v432 = vunpack.c.l.b16 %v61
    %v433 = vunpack.c.h.b16 %v61
    %v434 = vunpack.c.l.b16 %v62
    %v435 = vunpack.c.h.b16 %v62
    %v436 = vunpack.c.l.b16 %v63
    %v437 = vunpack.c.h.b16 %v63
    %v438 = vunpack.c.l.b16 %v64
    %v439 = vunpack.c.h.b16 %v64
    %v440 = vunpack.c.l.b16 %v65
    %v441 = vunpack.c.h.b16 %v65
    %v442 = vunpack.c.l.b16 %v66
    %v443 = vunpack.c.h.b16 %v66
    %v444 = vunpack.c.l.b16 %v67
    %v445 = vunpack.c.h.b16 %v67
    %v446 = vunpack.c.l.b16 %v68
    %v447 = vunpack.c.h.b16 %v68
    %v448 = vunpack.c.l.b16 %v69
    %v449 = vunpack.c.h.b16 %v69
    %v450 = vunpack.c.l.b16 %v70
    %v451 = vunpack.c.h.b16 %v70
    %v452 = vunpack.c.l.b16 %v71
    %v453 = vunpack.c.h.b16 %v71
    %v454 = vunpack.c.l.b16 %v72
    %v455 = vunpack.c.h.b16 %v72
    %v456 = vunpack.c.l.b16 %v73
    %v457 = vunpack.c.h.b16 %v73
    %v458 = vunpack.c.l.b16 %v74
    %v459 = vunpack.c.h.b16 %v74
    %v460 = vunpack.c.l.b16 %v75
    %v461 = vunpack.c.h.b16 %v75
    %v462 = vunpack.c.l.b16 %v76
    %v463 = vunpack.c.h.b16 %v76
    %v464 = vunpack.c.l.b16 %v77
    %v465 = vunpack.c.h.b16 %v77
    %v466 = vunpack.c.l.b16 %v78
    %v467 = vunpack.c.h.b16 %v78
    %v468 = vunpack.c.l.b16 %v79
    %v469 = vunpack.c.h.b16 %v79
    %v470 = vunpack.c.l.b16 %v80
    %v471 = vunpack.c.h.b16 %v80
    %v472 = vunpack.c.l.b16 %v81
    %v473 = vunpack.c.h.b16 %v81
    %v474 = vunpack.c.l.b16 %v82
    %v475 = vunpack.c.h.b16 %v82
    %v476 = vunpack.c.l.b16 %v83
    %v477 = vunpack.c.h.b16 %v83
    %v478 = vunpack.c.l.b16 %v84
    %v479 = vunpack.c.h.b16 %v84
    %v480 = vunpack.c.l.b16 %v85
    %v481 = vunpack.c.h.b16 %v85
    %v482 = vunpack.c.l.b16 %v86
    %v483 = vunpack.c.h.b16 %v86
    %v484 = vunpack.c.l.b16 %v87
    %v485 = vunpack.c.h.b16 %v87
    %v486 = vunpack.c.l.b16 %v88
    %v487 = vunpack.c.h.b16 %v88
    %v488 = vunpack.c.l.b16 %v89
    %v489 = vunpack.c.h.b16 %v89
    %v490 = vunpack.c.l.b16 %v90
    %v491 = vunpack.c.h.b16 %v90
    %v492 = vunpack.c.l.b16 %v91
    %v493 = vunpack.c.h.b16 %v91
    %v494 = vunpack.c.l.b16 %v92
    %v495 = vunpack.c.h.b16 %v92
    %v496 = vunpack.c.l.b16 %v93
    %v497 = vunpack.c.h.b16 %v93
    %v498 = vunpack.c.l.b16 %v94
    %v499 = vunpack.c.h.b16 %v94
    %v500 = vunpack.c.l.b16 %v95
    %v501 = vunpack.c.h.b16 %v95
    %v502 = vunpack.c.l.b16 %v96
    %v503 = vunpack.c.h.b16 %v96
    %v504 = vunpack.c.l.b16 %v97
    %v505 = vunpack.c.h.b16 %v97
    %v506 = vunpack.c.l.b16 %v98
    %v507 = vunpack.c.h.b16 %v98
    %v508 = vunpack.c.l.b16 %v99
    %v509 = vunpack.c.h.b16 %v99
    %v510 = vunpack.c.l.b16 %v100
    %v511 = vunpack.c.h.b16 %v100
    %v512 = vunpack.c.l.b16 %v101
    %v513 = vunpack.c.h.b16 %v101
    %v514 = vunpack.c.l.b16 %v102
    %v515 = vunpack.c.h.b16 %v102
    %v516 = vunpack.c.l.b16 %v103
    %v517 = vunpack.c.h.b16 %v103
    %v518 = vunpack.c.l.b16 %v104
    %v519 = vunpack.c.h.b16 %v104
    %v520 = vunpack.c.l.b16 %v105
    %v521 = vunpack.c.h.b16 %v105
    %v522 = vunpack.c.l.b16 %v106
    %v523 = vunpack.c.h.b16 %v106
    %v524 = vunpack.c.l.b16 %v107
    %v525 = vunpack.c.h.b16 %v107
    %v526 = vunpack.c.l.b16 %v108
    %v527 = vunpack.c.h.b16 %v108
    %v528 = vunpack.c.l.b16 %v109
    %v529 = vunpack.c.h.b16 %v109
    %v530 = vunpack.c.l.b16 %v110
    %v531 = vunpack.c.h.b16 %v110
    %v532 = vunpack.c.l.b16 %v111
    %v533 = vunpack.c.h.b16 %v111
    %v534 = vunpack.c.l.b16 %v112
    %v535 = vunpack.c.h.b16 %v112
    %v536 = vunpack.c.l.b16 %v113
    %v537 = vunpack.c.h.b16 %v113
    %v538 = vunpack.c.l.b16 %v114
    %v539 = vunpack.c.h.b16 %v114
    %v540 = vunpack.c.l.b16 %v115
    %v541 = vunpack.c.h.b16 %v115
    %v542 = vunpack.c.l.b16 %v116
    %v543 = vunpack.c.h.b16 %v116
    %v544 = vunpack.c.l.b16 %v117
    %v545 = vunpack.c.h.b16 %v117
    %v546 = vunpack.c.l.b16 %v118
    %v547 = vunpack.c.h.b16 %v118
    %v548 = vunpack.c.l.b16 %v119
    %v549 = vunpack.c.h.b16 %v119
    %v550 = vunpack.c.l.b16 %v120
    %v551 = vunpack.c.h.b16 %v120
    %v552 = vunpack.c.l.b16 %v121
    %v553 = vunpack.c.h.b16 %v121
    %v554 = vunpack.c.l.b16 %v122
    %v555 = vunpack.c.h.b16 %v122
    %v556 = vunpack.c.l.b16 %v123
    %v557 = vunpack.c.h.b16 %v123
    %v558 = vunpack.c.l.b16 %v124
    %v559 = vunpack.c.h.b16 %v124
    %v560 = vunpack.c.l.b16 %v125
    %v561 = vunpack.c.h.b16 %v125
    %v562 = vunpack.c.l.b16 %v126
    %v563 = vunpack.c.h.b16 %v126
    %v564 = vunpack.c.l.b16 %v127
    %v565 = vunpack.c.h.b16 %v127
    %v566 = vunpack.c.l.b16 %v128
    %v567 = vunpack.c.h.b16 %v128
    %v568 = vunpack.c.l.b16 %v129
    %v569 = vunpack.c.h.b16 %v129
    %v570 = vunpack.c.l.b16 %v130
    %v571 = vunpack.c.h.b16 %v130
    %v572 = vunpack.c.l.b16 %v131
    %v573 = vunpack.c.h.b16 %v131
    %v574 = vunpack.c.l.b16 %v132
    %v575 = vunpack.c.h.b16 %v132
    %v576 = vunpack.c.l.b16 %v133
    %v577 = vunpack.c.h.b16 %v133
    %v578 = vunpack.c.l.b16 %v134
    %v579 = vunpack.c.h.b16 %v134
    %v580 = vunpack.c.l.b16 %v135
    %v581 = vunpack.c.h.b16 %v135
    %v582 = vunpack.c.l.b16 %v136
    %v583 = vunpack.c.h.b16 %v136
    %v584 = vunpack.c.l.b16 %v137
    %v585 = vunpack.c.h.b16 %v137
    %v586 = vunpack.c.l.b16 %v138
    %v587 = vunpack.c.h.b16 %v138
    %v588 = vunpack.c.l.b16 %v139
    %v589 = vunpack.c.h.b16 %v139
    %v590 = vunpack.c.l.b16 %v140
    %v591 = vunpack.c.h.b16 %v140
    %v592 = vunpack.c.l.b16 %v141
    %v593 = vunpack.c.h.b16 %v141
    %v594 = vunpack.c.l.b16 %v142
    %v595 = vunpack.c.h.b16 %v142
    %v596 = vunpack.c.l.b16 %v143
    %v597 = vunpack.c.h.b16 %v143
    %v598 = vunpack.c.l.b16 %v144
    %v599 = vunpack.c.h.b16 %v144
    %v600 = vunpack.c.l.b16 %v145
    %v601 = vunpack.c.h.b16 %v145
    %v602 = vunpack.c.l.b16 %v146
    %v603 = vunpack.c.h.b16 %v146
    %v604 = vunpack.c.l.b16 %v147
    %v605 = vunpack.c.h.b16 %v147
    %v606 = vunpack.c.l.b16 %v148
    %v607 = vunpack.c.h.b16 %v148
    %v608 = vunpack.c.l.b16 %v149
    %v609 = vunpack.c.h.b16 %v149
    %v610 = vunpack.c.l.b16 %v150
    %v611 = vunpack.c.h.b16 %v150
    %v612 = vunpack.c.l.b16 %v151
    %v613 = vunpack.c.h.b16 %v151
    %v614 = vunpack.c.l.b16 %v152
    %v615 = vunpack.c.h.b16 %v152
    %v616 = vunpack.c.l.b16 %v153
    %v617 = vunpack.c.h.b16 %v153
    %v618 = vunpack.c.l.b16 %v154
    %v619 = vunpack.c.h.b16 %v154
    %v620 = vunpack.c.l.b16 %v155
    %v621 = vunpack.c.h.b16 %v155
    %v622 = vunpack.c.l.b16 %v156
    %v623 = vunpack.c.h.b16 %v156
    %v624 = vunpack.c.l.b16 %v157
    %v625 = vunpack.c.h.b16 %v157
    %v626 = vunpack.c.l.b16 %v158
    %v627 = vunpack.c.h.b16 %v158
    %v628 = vunpack.c.l.b16 %v159
    %v629 = vunpack.c.h.b16 %v159
    %v630 = vunpack.c.l.b16 %v160
    %v631 = vunpack.c.h.b16 %v160
    %v632 = vunpack.c.l.b16 %v161
    %v633 = vunpack.c.h.b16 %v161
    %v634 = vunpack.c.l.b16 %v162
    %v635 = vunpack.c.h.b16 %v162
    %v636 = vunpack.c.l.b16 %v163
    %v637 = vunpack.c.h.b16 %v163
    %v638 = vunpack.c.l.b16 %v164
    %v639 = vunpack.c.h.b16 %v164
    %v640 = vunpack.c.l.b16 %v165
    %v641 = vunpack.c.h.b16 %v165
    %v642 = vunpack.c.l.b16 %v166
    %v643 = vunpack.c.h.b16 %v166
    %v644 = vunpack.c.l.b16 %v167
    %v645 = vunpack.c.h.b16 %v167
    %v646 = vunpack.c.l.b16 %v168
    %v647 = vunpack.c.h.b16 %v168
    %v648 = vunpack.c.l.b16 %v169
    %v649 = vunpack.c.h.b16 %v169
    %v650 = vunpack.c.l.b16 %v170
    %v651 = vunpack.c.h.b16 %v170
    %v652 = vunpack.c.l.b16 %v171
    %v653 = vunpack.c.h.b16 %v171
    %v654 = vunpack.c.l.b16 %v172
    %v655 = vunpack.c.h.b16 %v172
    %v656 = vunpack.c.l.b16 %v173
    %v657 = vunpack.c.h.b16 %v173
    %v658 = vunpack.c.l.b16 %v174
    %v659 = vunpack.c.h.b16 %v174
    %v660 = vunpack.c.l.b16 %v175
    %v661 = vunpack.c.h.b16 %v175
    %v662 = vunpack.c.l.b16 %v176
    %v663 = vunpack.c.h.b16 %v176
    %v664 = vunpack.c.l.b16 %v177
    %v665 = vunpack.c.h.b16 %v177
    %v666 = vunpack.c.l.b16 %v178
    %v667 = vunpack.c.h.b16 %v178
    %v668 = vunpack.c.l.b16 %v179
    %v669 = vunpack.c.h.b16 %v179
    %v670 = vunpack.c.l.b16 %v180
    %v671 = vunpack.c.h.b16 %v180
    %v672 = vunpack.c.l.b16 %v181
    %v673 = vunpack.c.h.b16 %v181
    %v674 = vunpack.c.l.b16 %v182
    %v675 = vunpack.c.h.b16 %v182
    %v676 = vunpack.c.l.b16 %v183
    %v677 = vunpack.c.h.b16 %v183
    %v678 = vunpack.c.l.b16 %v184
    %v679 = vunpack.c.h.b16 %v184
    %v680 = vunpack.c.l.b16 %v185
    %v681 = vunpack.c.h.b16 %v185
    %v682 = vunpack.c.l.b16 %v186
    %v683 = vunpack.c.h.b16 %v186
    %v684 = vunpack.c.l.b16 %v187
    %v685 = vunpack.c.h.b16 %v187
    %v686 = vpack.c.b16 %v370, %v366
    %v687 = vpack.c.b16 %v371, %v367
    %v688 = vpack.c.b16 %v372, %v368
    %v689 = vpack.c.b16 %v373, %v369
    %v690 = vpack.c.b16 %v378, %v374
    %v691 = vpack.c.b16 %v379, %v375
    %v692 = vpack.c.b16 %v380, %v376
    %v693 = vpack.c.b16 %v381, %v377
    %v694 = vpack.c.b16 %v386, %v382
    %v695 = vpack.c.b16 %v387, %v383
    %v696 = vpack.c.b16 %v388, %v384
    %v697 = vpack.c.b16 %v389, %v385
    %v698 = vpack.c.b16 %v394, %v390
    %v699 = vpack.c.b16 %v395, %v391
    %v700 = vpack.c.b16 %v396, %v392
    %v701 = vpack.c.b16 %v397, %v393
    %v702 = vpack.c.b16 %v402, %v398
    %v703 = vpack.c.b16 %v403, %v399
    %v704 = vpack.c.b16 %v404, %v400
    %v705 = vpack.c.b16 %v405, %v401
    %v706 = vpack.c.b16 %v410, %v406
    %v707 = vpack.c.b16 %v411, %v407
    %v708 = vpack.c.b16 %v412, %v408
    %v709 = vpack.c.b16 %v413, %v409
    %v710 = vpack.c.b16 %v418, %v414
    %v711 = vpack.c.b16 %v419, %v415
    %v712 = vpack.c.b16 %v420, %v416
    %v713 = vpack.c.b16 %v421, %v417
    %v714 = vpack.c.b16 %v426, %v422
    %v715 = vpack.c.b16 %v427, %v423
    %v716 = vpack.c.b16 %v428, %v424
    %v717 = vpack.c.b16 %v429, %v425
    %v718 = vpack.c.b16 %v434, %v430
    %v719 = vpack.c.b16 %v435, %v431
    %v720 = vpack.c.b16 %v436, %v432
    %v721 = vpack.c.b16 %v437, %v433
    %v722 = vpack.c.b16 %v442, %v438
    %v723 = vpack.c.b16 %v443, %v439
    %v724 = vpack.c.b16 %v444, %v440
    %v725 = vpack.c.b16 %v445, %v441
    %v726 = vpack.c.b16 %v450, %v446
    %v727 = vpack.c.b16 %v451, %v447
    %v728 = vpack.c.b16 %v452, %v448
    %v729 = vpack.c.b16 %v453, %v449
    %v730 = vpack.c.b16 %v458, %v454
    %v731 = vpack.c.b16 %v459, %v455
    %v732 = vpack.c.b16 %v460, %v456
    %v733 = vpack.c.b16 %v461, %v457
    %v734 = vpack.c.b16 %v466, %v462
    %v735 = vpack.c.b16 %v467, %v463
    %v736 = vpack.c.b16 %v468, %v464
    %v737 = vpack.c.b16 %v469, %v465
    %v738 = vpack.c.b16 %v474, %v470
    %v739 = vpack.c.b16 %v475, %v471
    %v740 = vpack.c.b16 %v476, %v472
    %v741 = vpack.c.b16 %v477, %v473
    %v742 = vpack.c.b16 %v482, %v478
    %v743 = vpack.c.b16 %v483, %v479
    %v744 = vpack.c.b16 %v484, %v480
    %v745 = vpack.c.b16 %v485, %v481
    %v746 = vpack.c.b16 %v490, %v486
    %v747 = vpack.c.b16 %v491, %v487
    %v748 = vpack.c.b16 %v492, %v488
    %v749 = vpack.c.b16 %v493, %v489
    %v750 = vpack.c.b16 %v498, %v494
    %v751 = vpack.c.b16 %v499, %v495
    %v752 = vpack.c.b16 %v500, %v496
    %v753 = vpack.c.b16 %v501, %v497
    %v754 = vpack.c.b16 %v506, %v502
    %v755 = vpack.c.b16 %v507, %v503
    %v756 = vpack.c.b16 %v508, %v504
    %v757 = vpack.c.b16 %v509, %v505
    %v758 = vpack.c.b16 %v514, %v510
    %v759 = vpack.c.b16 %v515, %v511
    %v760 = vpack.c.b16 %v516, %v512
    %v761 = vpack.c.b16 %v517, %v513
    %v762 = vpack.c.b16 %v522, %v518
    %v763 = vpack.c.b16 %v523, %v519
    %v764 = vpack.c.b16 %v524, %v520
    %v765 = vpack.c.b16 %v525, %v521
    %v766 = vpack.c.b16 %v530, %v526
    %v767 = vpack.c.b16 %v531, %v527
    %v768 = vpack.c.b16 %v532, %v528
    %v769 = vpack.c.b16 %v533, %v529
    %v770 = vpack.c.b16 %v538, %v534
    %v771 = vpack.c.b16 %v539, %v535
    %v772 = vpack.c.b16 %v540, %v536
    %v773 = vpack.c.b16 %v541, %v537
    %v774 = vpack.c.b16 %v546, %v542
    %v775 = vpack.c.b16 %v547, %v543
    %v776 = vpack.c.b16 %v548, %v544
    %v777 = vpack.c.b16 %v549, %v545
    %v778 = vpack.c.b16 %v554, %v550
    %v779 = vpack.c.b16 %v555, %v551
    %v780 = vpack.c.b16 %v556, %v552
    %v781 = vpack.c.b16 %v557, %v553
    %v782 = vpack.c.b16 %v562, %v558
    %v783 = vpack.c.b16 %v563, %v559
    %v784 = vpack.c.b16 %v564, %v560
    %v785 = vpack.c.b16 %v565, %v561
    %v786 = vpack.c.b16 %v570, %v566
    %v787 = vpack.c.b16 %v571, %v567
    %v788 = vpack.c.b16 %v572, %v568
    %v789 = vpack.c.b16 %v573, %v569
    %v790 = vpack.c.b16 %v578, %v574
    %v791 = vpack.c.b16 %v579, %v575
    %v792 = vpack.c.b16 %v580, %v576
    %v793 = vpack.c.b16 %v581, %v577
    %v794 = vpack.c.b16 %v586, %v582
    %v795 = vpack.c.b16 %v587, %v583
    %v796 = vpack.c.b16 %v588, %v584
    %v797 = vpack.c.b16 %v589, %v585
    %v798 = vpack.c.b16 %v594, %v590
    %v799 = vpack.c.b16 %v595, %v591
    %v800 = vpack.c.b16 %v596, %v592
    %v801 = vpack.c.b16 %v597, %v593
    %v802 = vpack.c.b16 %v602, %v598
    %v803 = vpack.c.b16 %v603, %v599
    %v804 = vpack.c.b16 %v604, %v600
    %v805 = vpack.c.b16 %v605, %v601
    %v806 = vpack.c.b16 %v610, %v606
    %v807 = vpack.c.b16 %v611, %v607
    %v808 = vpack.c.b16 %v612, %v608
    %v809 = vpack.c.b16 %v613, %v609
    %v810 = vpack.c.b16 %v618, %v614
    %v811 = vpack.c.b16 %v619, %v615
    %v812 = vpack.c.b16 %v620, %v616
    %v813 = vpack.c.b16 %v621, %v617
    %v814 = vpack.c.b16 %v626, %v622
    %v815 = vpack.c.b16 %v627, %v623
    %v816 = vpack.c.b16 %v628, %v624
    %v817 = vpack.c.b16 %v629, %v625
    %v818 = vpack.c.b16 %v634, %v630
    %v819 = vpack.c.b16 %v635, %v631
    %v820 = vpack.c.b16 %v636, %v632
    %v821 = vpack.c.b16 %v637, %v633
    %v822 = vpack.c.b16 %v642, %v638
    %v823 = vpack.c.b16 %v643, %v639
    %v824 = vpack.c.b16 %v644, %v640
    %v825 = vpack.c.b16 %v645, %v641
    %v826 = vpack.c.b16 %v650, %v646
    %v827 = vpack.c.b16 %v651, %v647
    %v828 = vpack.c.b16 %v652, %v648
    %v829 = vpack.c.b16 %v653, %v649
    %v830 = vpack.c.b16 %v658, %v654
    %v831 = vpack.c.b16 %v659, %v655
    %v832 = vpack.c.b16 %v660, %v656
    %v833 = vpack.c.b16 %v661, %v657
    %v834 = vpack.c.b16 %v666, %v662
    %v835 = vpack.c.b16 %v667, %v663
    %v836 = vpack.c.b16 %v668, %v664
    %v837 = vpack.c.b16 %v669, %v665
    %v838 = vpack.c.b16 %v674, %v670
    %v839 = vpack.c.b16 %v675, %v671
    %v840 = vpack.c.b16 %v676, %v672
    %v841 = vpack.c.b16 %v677, %v673
    %v842 = vpack.c.b16 %v682, %v678
    %v843 = vpack.c.b16 %v683, %v679
    %v844 = vpack.c.b16 %v684, %v680
    %v845 = vpack.c.b16 %v685, %v681
    %1006 = vmatprep.subr.bf16.mxu0 %v715
    %1007 = vmatpush1.bf16.msra.mxu0 %v714
    %1008 = vmatprep.subr.bf16.mxu0 %v711
    %1009 = vmatpush1.bf16.msra.mxu0 %v710
    %1010 = vmatprep.subr.bf16.mxu0 %v707
    %1011 = vmatpush1.bf16.msra.mxu0 %v706
    %1012 = vmatprep.subr.bf16.mxu0 %v703
    %1013 = vmatpush1.bf16.msra.mxu0 %v702
    %1014 = vmatprep.subr.bf16.mxu0 %v699
    %1015 = vmatpush1.bf16.msra.mxu0 %v698
    %1016 = vmatprep.subr.bf16.mxu0 %v695
    %1017 = vmatpush1.bf16.msra.mxu0 %v694
    %1018 = vmatprep.subr.bf16.mxu0 %v691
    %1019 = vmatpush1.bf16.msra.mxu0 %v690
    %1020 = vmatprep.subr.bf16.mxu0 %v687
    %1021 = vmatpush1.bf16.msra.mxu0 %v686
    %1022 = vmatprep.subr.bf16.mxu0 %v747
    %1023 = vmatpush2.bf16.msra.mxu0 %v746
    %1024 = vmatprep.subr.bf16.mxu0 %v743
    %1025 = vmatpush2.bf16.msra.mxu0 %v742
    %1026 = vmatprep.subr.bf16.mxu0 %v739
    %1027 = vmatpush2.bf16.msra.mxu0 %v738
    %1028 = vmatprep.subr.bf16.mxu0 %v735
    %1029 = vmatpush2.bf16.msra.mxu0 %v734
    %1030 = vmatprep.subr.bf16.mxu0 %v731
    %1031 = vmatpush2.bf16.msra.mxu0 %v730
    %1032 = vmatprep.subr.bf16.mxu0 %v727
    %1033 = vmatpush2.bf16.msra.mxu0 %v726
    %1034 = vmatprep.subr.bf16.mxu0 %v723
    %1035 = vmatpush2.bf16.msra.mxu0 %v722
    %1036 = vmatprep.subr.bf16.mxu0 %v719
    %1037 = vmatpush2.bf16.msra.mxu0 %v718
    %1038 = vmatprep.mubr.bf16.mxu0 %v197
    %1039 = vmatmul.mubr.bf16.gmra.mxu0 %v196
    %v1040 = vpop.f32.mrf.mxu0
    %v1041 = vadd.f32 0.0, %v1040
    %v1042 = vpop.f32.mrf.mxu0
    %v1043 = vadd.f32 0.0, %v1042
    %v1044 = vpop.f32.mrf.mxu0
    %v1045 = vpop.f32.mrf.mxu0
    %1046 = vdwg.mxu0
    %1047 = vmatprep.subr.bf16.mxu0 %v779
    %1048 = vmatpush1.bf16.msra.mxu0 %v778
    %1049 = vmatprep.subr.bf16.mxu0 %v775
    %1050 = vmatpush1.bf16.msra.mxu0 %v774
    %1051 = vmatprep.subr.bf16.mxu0 %v771
    %1052 = vmatpush1.bf16.msra.mxu0 %v770
    %1053 = vmatprep.subr.bf16.mxu0 %v767
    %1054 = vmatpush1.bf16.msra.mxu0 %v766
    %1055 = vmatprep.subr.bf16.mxu0 %v763
    %1056 = vmatpush1.bf16.msra.mxu0 %v762
    %1057 = vmatprep.subr.bf16.mxu0 %v759
    %1058 = vmatpush1.bf16.msra.mxu0 %v758
    %1059 = vmatprep.subr.bf16.mxu0 %v755
    %1060 = vmatpush1.bf16.msra.mxu0 %v754
    %1061 = vmatprep.subr.bf16.mxu0 %v751
    %1062 = vmatpush1.bf16.msra.mxu0 %v750
    %1063 = vmatprep.subr.bf16.mxu0 %v811
    %1064 = vmatpush2.bf16.msra.mxu0 %v810
    %1065 = vmatprep.subr.bf16.mxu0 %v807
    %1066 = vmatpush2.bf16.msra.mxu0 %v806
    %1067 = vmatprep.subr.bf16.mxu0 %v803
    %1068 = vmatpush2.bf16.msra.mxu0 %v802
    %1069 = vmatprep.subr.bf16.mxu0 %v799
    %1070 = vmatpush2.bf16.msra.mxu0 %v798
    %1071 = vmatprep.subr.bf16.mxu0 %v795
    %1072 = vmatpush2.bf16.msra.mxu0 %v794
    %1073 = vmatprep.subr.bf16.mxu0 %v791
    %1074 = vmatpush2.bf16.msra.mxu0 %v790
    %1075 = vmatprep.subr.bf16.mxu0 %v787
    %1076 = vmatpush2.bf16.msra.mxu0 %v786
    %1077 = vmatprep.subr.bf16.mxu0 %v783
    %1078 = vmatpush2.bf16.msra.mxu0 %v782
    %1079 = vmatprep.mubr.bf16.mxu0 %v199
    %1080 = vmatmul.mubr.bf16.gmra.mxu0 %v198
    %v1081 = vpop.f32.mrf.mxu0
    %v1082 = vadd.f32 %v1041, %v1081
    %v1083 = vpop.f32.mrf.mxu0
    %v1084 = vadd.f32 %v1043, %v1083
    %v1085 = vpop.f32.mrf.mxu0
    %v1086 = vpop.f32.mrf.mxu0
    %1087 = vdwg.mxu0
    %1088 = vmatprep.subr.bf16.mxu0 %v843
    %1089 = vmatpush1.bf16.msra.mxu0 %v842
    %1090 = vmatprep.subr.bf16.mxu0 %v839
    %1091 = vmatpush1.bf16.msra.mxu0 %v838
    %1092 = vmatprep.subr.bf16.mxu0 %v835
    %1093 = vmatpush1.bf16.msra.mxu0 %v834
    %1094 = vmatprep.subr.bf16.mxu0 %v831
    %1095 = vmatpush1.bf16.msra.mxu0 %v830
    %1096 = vmatprep.subr.bf16.mxu0 %v827
    %1097 = vmatpush1.bf16.msra.mxu0 %v826
    %1098 = vmatprep.subr.bf16.mxu0 %v823
    %1099 = vmatpush1.bf16.msra.mxu0 %v822
    %1100 = vmatprep.subr.bf16.mxu0 %v819
    %1101 = vmatpush1.bf16.msra.mxu0 %v818
    %1102 = vmatprep.subr.bf16.mxu0 %v815
    %1103 = vmatpush1.bf16.msra.mxu0 %v814
    %1104 = vmatprep.subr.bf16.mxu0 0
    %1105 = vmatpush2.bf16.msra.mxu0 0
    %1106 = vmatprep.subr.bf16.mxu0 0
    %1107 = vmatpush2.bf16.msra.mxu0 0
    %1108 = vmatprep.subr.bf16.mxu0 0
    %1109 = vmatpush2.bf16.msra.mxu0 0
    %1110 = vmatprep.subr.bf16.mxu0 0
    %1111 = vmatpush2.bf16.msra.mxu0 0
    %1112 = vmatprep.subr.bf16.mxu0 0
    %1113 = vmatpush2.bf16.msra.mxu0 0
    %1114 = vmatprep.subr.bf16.mxu0 0
    %1115 = vmatpush2.bf16.msra.mxu0 0
    %1116 = vmatprep.subr.bf16.mxu0 0
    %1117 = vmatpush2.bf16.msra.mxu0 0
    %1118 = vmatprep.subr.bf16.mxu0 0
    %1119 = vmatpush2.bf16.msra.mxu0 0
    %1120 = vmatprep.mubr.bf16.mxu0 0
    %1121 = vmatmul.mubr.bf16.gmra.mxu0 %v200
    %v1122 = vpop.f32.mrf.mxu0
    %v1123 = vadd.f32 %v1082, %v1122
    %v1124 = vpop.f32.mrf.mxu0
    %v1125 = vadd.f32 %v1084, %v1124
    %v1126 = vpop.f32.mrf.mxu0
    %v1127 = vpop.f32.mrf.mxu0
    %1128 = vdwg.mxu0
    %1129 = vmatprep.subr.bf16.mxu0 %v717
    %1130 = vmatpush1.bf16.msra.mxu0 %v716
    %1131 = vmatprep.subr.bf16.mxu0 %v713
    %1132 = vmatpush1.bf16.msra.mxu0 %v712
    %1133 = vmatprep.subr.bf16.mxu0 %v709
    %1134 = vmatpush1.bf16.msra.mxu0 %v708
    %1135 = vmatprep.subr.bf16.mxu0 %v705
    %1136 = vmatpush1.bf16.msra.mxu0 %v704
    %1137 = vmatprep.subr.bf16.mxu0 %v701
    %1138 = vmatpush1.bf16.msra.mxu0 %v700
    %1139 = vmatprep.subr.bf16.mxu0 %v697
    %1140 = vmatpush1.bf16.msra.mxu0 %v696
    %1141 = vmatprep.subr.bf16.mxu0 %v693
    %1142 = vmatpush1.bf16.msra.mxu0 %v692
    %1143 = vmatprep.subr.bf16.mxu0 %v689
    %1144 = vmatpush1.bf16.msra.mxu0 %v688
    %1145 = vmatprep.subr.bf16.mxu0 %v749
    %1146 = vmatpush2.bf16.msra.mxu0 %v748
    %1147 = vmatprep.subr.bf16.mxu0 %v745
    %1148 = vmatpush2.bf16.msra.mxu0 %v744
    %1149 = vmatprep.subr.bf16.mxu0 %v741
    %1150 = vmatpush2.bf16.msra.mxu0 %v740
    %1151 = vmatprep.subr.bf16.mxu0 %v737
    %1152 = vmatpush2.bf16.msra.mxu0 %v736
    %1153 = vmatprep.subr.bf16.mxu0 %v733
    %1154 = vmatpush2.bf16.msra.mxu0 %v732
    %1155 = vmatprep.subr.bf16.mxu0 %v729
    %1156 = vmatpush2.bf16.msra.mxu0 %v728
    %1157 = vmatprep.subr.bf16.mxu0 %v725
    %1158 = vmatpush2.bf16.msra.mxu0 %v724
    %1159 = vmatprep.subr.bf16.mxu0 %v721
    %1160 = vmatpush2.bf16.msra.mxu0 %v720
    %1161 = vmatprep.mubr.bf16.mxu0 %v197
    %1162 = vmatmul.mubr.bf16.gmra.mxu0 %v196
    %v1163 = vpop.f32.mrf.mxu0
    %v1164 = vadd.f32 0.0, %v1163
    %v1165 = vpop.f32.mrf.mxu0
    %v1166 = vadd.f32 0.0, %v1165
    %v1167 = vpop.f32.mrf.mxu0
    %v1168 = vpop.f32.mrf.mxu0
    %1169 = vdwg.mxu0
    %1170 = vmatprep.subr.bf16.mxu0 %v781
    %1171 = vmatpush1.bf16.msra.mxu0 %v780
    %1172 = vmatprep.subr.bf16.mxu0 %v777
    %1173 = vmatpush1.bf16.msra.mxu0 %v776
    %1174 = vmatprep.subr.bf16.mxu0 %v773
    %1175 = vmatpush1.bf16.msra.mxu0 %v772
    %1176 = vmatprep.subr.bf16.mxu0 %v769
    %1177 = vmatpush1.bf16.msra.mxu0 %v768
    %1178 = vmatprep.subr.bf16.mxu0 %v765
    %1179 = vmatpush1.bf16.msra.mxu0 %v764
    %1180 = vmatprep.subr.bf16.mxu0 %v761
    %1181 = vmatpush1.bf16.msra.mxu0 %v760
    %1182 = vmatprep.subr.bf16.mxu0 %v757
    %1183 = vmatpush1.bf16.msra.mxu0 %v756
    %1184 = vmatprep.subr.bf16.mxu0 %v753
    %1185 = vmatpush1.bf16.msra.mxu0 %v752
    %1186 = vmatprep.subr.bf16.mxu0 %v813
    %1187 = vmatpush2.bf16.msra.mxu0 %v812
    %1188 = vmatprep.subr.bf16.mxu0 %v809
    %1189 = vmatpush2.bf16.msra.mxu0 %v808
    %1190 = vmatprep.subr.bf16.mxu0 %v805
    %1191 = vmatpush2.bf16.msra.mxu0 %v804
    %1192 = vmatprep.subr.bf16.mxu0 %v801
    %1193 = vmatpush2.bf16.msra.mxu0 %v800
    %1194 = vmatprep.subr.bf16.mxu0 %v797
    %1195 = vmatpush2.bf16.msra.mxu0 %v796
    %1196 = vmatprep.subr.bf16.mxu0 %v793
    %1197 = vmatpush2.bf16.msra.mxu0 %v792
    %1198 = vmatprep.subr.bf16.mxu0 %v789
    %1199 = vmatpush2.bf16.msra.mxu0 %v788
    %1200 = vmatprep.subr.bf16.mxu0 %v785
    %1201 = vmatpush2.bf16.msra.mxu0 %v784
    %1202 = vmatprep.mubr.bf16.mxu0 %v199
    %1203 = vmatmul.mubr.bf16.gmra.mxu0 %v198
    %v1204 = vpop.f32.mrf.mxu0
    %v1205 = vadd.f32 %v1164, %v1204
    %v1206 = vpop.f32.mrf.mxu0
    %v1207 = vadd.f32 %v1166, %v1206
    %v1208 = vpop.f32.mrf.mxu0
    %v1209 = vpop.f32.mrf.mxu0
    %1210 = vdwg.mxu0
    %1211 = vmatprep.subr.bf16.mxu0 %v845
    %1212 = vmatpush1.bf16.msra.mxu0 %v844
    %1213 = vmatprep.subr.bf16.mxu0 %v841
    %1214 = vmatpush1.bf16.msra.mxu0 %v840
    %1215 = vmatprep.subr.bf16.mxu0 %v837
    %1216 = vmatpush1.bf16.msra.mxu0 %v836
    %1217 = vmatprep.subr.bf16.mxu0 %v833
    %1218 = vmatpush1.bf16.msra.mxu0 %v832
    %1219 = vmatprep.subr.bf16.mxu0 %v829
    %1220 = vmatpush1.bf16.msra.mxu0 %v828
    %1221 = vmatprep.subr.bf16.mxu0 %v825
    %1222 = vmatpush1.bf16.msra.mxu0 %v824
    %1223 = vmatprep.subr.bf16.mxu0 %v821
    %1224 = vmatpush1.bf16.msra.mxu0 %v820
    %1225 = vmatprep.subr.bf16.mxu0 %v817
    %1226 = vmatpush1.bf16.msra.mxu0 %v816
    %1227 = vmatprep.subr.bf16.mxu0 0
    %1228 = vmatpush2.bf16.msra.mxu0 0
    %1229 = vmatprep.subr.bf16.mxu0 0
    %1230 = vmatpush2.bf16.msra.mxu0 0
    %1231 = vmatprep.subr.bf16.mxu0 0
    %1232 = vmatpush2.bf16.msra.mxu0 0
    %1233 = vmatprep.subr.bf16.mxu0 0
    %1234 = vmatpush2.bf16.msra.mxu0 0
    %1235 = vmatprep.subr.bf16.mxu0 0
    %1236 = vmatpush2.bf16.msra.mxu0 0
    %1237 = vmatprep.subr.bf16.mxu0 0
    %1238 = vmatpush2.bf16.msra.mxu0 0
    %1239 = vmatprep.subr.bf16.mxu0 0
    %1240 = vmatpush2.bf16.msra.mxu0 0
    %1241 = vmatprep.subr.bf16.mxu0 0
    %1242 = vmatpush2.bf16.msra.mxu0 0
    %1243 = vmatprep.mubr.bf16.mxu0 0
    %1244 = vmatmul.mubr.bf16.gmra.mxu0 %v200
    %v1245 = vpop.f32.mrf.mxu0
    %v1246 = vadd.f32 %v1205, %v1245
    %v1247 = vpop.f32.mrf.mxu0
    %v1248 = vadd.f32 %v1207, %v1247
    %v1249 = vpop.f32.mrf.mxu0
    %v1250 = vpop.f32.mrf.mxu0
    %1251 = vdwg.mxu0
    %v1252 = vmax.f32 %v1123, 0.0
    %v1253 = vmax.f32 %v1125, 0.0
    %v1254 = vmax.f32 %v1246, 0.0
    %v1255 = vmax.f32 %v1248, 0.0
    %v1256 = vpack.c.bf16 %v1252, %v1252
    %v1257 = vpack.c.bf16 %v1253, %v1253
    %v1258 = vpack.c.bf16 %v1254, %v1254
    %v1259 = vpack.c.bf16 %v1255, %v1255
    %v1260 = vld [vmem:[%s2] sm:$0xff]
    %v1261 = vld [vmem:[%s2 + $0x8] sm:$0xff]
    %v1262 = vld [vmem:[%s2 + $0x10] sm:$0xff]
    %v1263 = vld [vmem:[%s2 + $0x18] sm:$0xff]
    %v1264 = vld [vmem:[%s2 + $0x20] sm:$0xff]
    %v1265 = vld [vmem:[%s2 + $0x28] sm:$0xff]
    %v1266 = vld [vmem:[%s2 + $0x30] sm:$0xff]
    %v1267 = vld [vmem:[%s2 + $0x38] sm:$0xff]
    %v1268 = vld [vmem:[%s2 + $0x40] sm:$0xff]
    %v1269 = vld [vmem:[%s2 + $0x48] sm:$0xff]
    %v1270 = vld [vmem:[%s2 + $0x50] sm:$0xff]
    %v1271 = vld [vmem:[%s2 + $0x58] sm:$0xff]
    %v1272 = vld [vmem:[%s2 + $0x60] sm:$0xff]
    %v1273 = vld [vmem:[%s2 + $0x68] sm:$0xff]
    %v1274 = vld [vmem:[%s2 + $0x70] sm:$0xff]
    %v1275 = vld [vmem:[%s2 + $0x78] sm:$0xff]
    %v1276 = vld [vmem:[%s2 + $0x80] sm:$0xff]
    %v1277 = vld [vmem:[%s2 + $0x88] sm:$0xff]
    %v1278 = vld [vmem:[%s2 + $0x90] sm:$0xff]
    %v1279 = vld [vmem:[%s2 + $0x98] sm:$0xff]
    %v1280 = vld [vmem:[%s2 + $0xa0] sm:$0xff]
    %v1281 = vld [vmem:[%s2 + $0xa8] sm:$0xff]
    %v1282 = vld [vmem:[%s2 + $0xb0] sm:$0xff]
    %v1283 = vld [vmem:[%s2 + $0xb8] sm:$0xff]
    %v1284 = vld [vmem:[%s2 + $0xc0] sm:$0xff]
    %v1285 = vld [vmem:[%s2 + $0xc8] sm:$0xff]
    %v1286 = vld [vmem:[%s2 + $0xd0] sm:$0xff]
    %v1287 = vld [vmem:[%s2 + $0xd8] sm:$0xff]
    %v1288 = vld [vmem:[%s2 + $0xe0] sm:$0xff]
    %v1289 = vld [vmem:[%s2 + $0xe8] sm:$0xff]
    %v1290 = vld [vmem:[%s2 + $0xf0] sm:$0xff]
    %v1291 = vld [vmem:[%s2 + $0xf8] sm:$0xff]
    %v1292 = vld [vmem:[%s2 + $0x100] sm:$0xff]
    %v1293 = vld [vmem:[%s2 + $0x108] sm:$0xff]
    %v1294 = vld [vmem:[%s2 + $0x110] sm:$0xff]
    %v1295 = vld [vmem:[%s2 + $0x118] sm:$0xff]
    %v1296 = vld [vmem:[%s2 + $0x120] sm:$0xff]
    %v1297 = vld [vmem:[%s2 + $0x128] sm:$0xff]
    %v1298 = vld [vmem:[%s2 + $0x130] sm:$0xff]
    %v1299 = vld [vmem:[%s2 + $0x138] sm:$0xff]
    %v1300 = vld [vmem:[%s2 + $0x140] sm:$0xff]
    %v1301 = vld [vmem:[%s2 + $0x148] sm:$0xff]
    %v1302 = vld [vmem:[%s2 + $0x150] sm:$0xff]
    %v1303 = vld [vmem:[%s2 + $0x158] sm:$0xff]
    %v1304 = vld [vmem:[%s2 + $0x160] sm:$0xff]
    %v1305 = vld [vmem:[%s2 + $0x168] sm:$0xff]
    %v1306 = vld [vmem:[%s2 + $0x170] sm:$0xff]
    %v1307 = vld [vmem:[%s2 + $0x178] sm:$0xff]
    %v1308 = vld [vmem:[%s2 + $0x180] sm:$0xff]
    %v1309 = vld [vmem:[%s2 + $0x188] sm:$0xff]
    %v1310 = vld [vmem:[%s2 + $0x190] sm:$0xff]
    %v1311 = vld [vmem:[%s2 + $0x198] sm:$0xff]
    %v1312 = vld [vmem:[%s2 + $0x1a0] sm:$0xff]
    %v1313 = vld [vmem:[%s2 + $0x1a8] sm:$0xff]
    %v1314 = vld [vmem:[%s2 + $0x1b0] sm:$0xff]
    %v1315 = vld [vmem:[%s2 + $0x1b8] sm:$0xff]
    %v1316 = vld [vmem:[%s2 + $0x1c0] sm:$0xff]
    %v1317 = vld [vmem:[%s2 + $0x1c8] sm:$0xff]
    %v1318 = vld [vmem:[%s2 + $0x1d0] sm:$0xff]
    %v1319 = vld [vmem:[%s2 + $0x1d8] sm:$0xff]
    %v1320 = vld [vmem:[%s2 + $0x1e0] sm:$0xff]
    %v1321 = vld [vmem:[%s2 + $0x1e8] sm:$0xff]
    %v1322 = vld [vmem:[%s2 + $0x1f0] sm:$0xff]
    %v1323 = vld [vmem:[%s2 + $0x1f8] sm:$0xff]
    %v1388 = vunpack.c.l.b16 %v1260
    %v1389 = vunpack.c.h.b16 %v1260
    %v1390 = vunpack.c.l.b16 %v1261
    %v1391 = vunpack.c.h.b16 %v1261
    %v1392 = vunpack.c.l.b16 %v1262
    %v1393 = vunpack.c.h.b16 %v1262
    %v1394 = vunpack.c.l.b16 %v1263
    %v1395 = vunpack.c.h.b16 %v1263
    %v1396 = vunpack.c.l.b16 %v1264
    %v1397 = vunpack.c.h.b16 %v1264
    %v1398 = vunpack.c.l.b16 %v1265
    %v1399 = vunpack.c.h.b16 %v1265
    %v1400 = vunpack.c.l.b16 %v1266
    %v1401 = vunpack.c.h.b16 %v1266
    %v1402 = vunpack.c.l.b16 %v1267
    %v1403 = vunpack.c.h.b16 %v1267
    %v1404 = vunpack.c.l.b16 %v1268
    %v1405 = vunpack.c.h.b16 %v1268
    %v1406 = vunpack.c.l.b16 %v1269
    %v1407 = vunpack.c.h.b16 %v1269
    %v1408 = vunpack.c.l.b16 %v1270
    %v1409 = vunpack.c.h.b16 %v1270
    %v1410 = vunpack.c.l.b16 %v1271
    %v1411 = vunpack.c.h.b16 %v1271
    %v1412 = vunpack.c.l.b16 %v1272
    %v1413 = vunpack.c.h.b16 %v1272
    %v1414 = vunpack.c.l.b16 %v1273
    %v1415 = vunpack.c.h.b16 %v1273
    %v1416 = vunpack.c.l.b16 %v1274
    %v1417 = vunpack.c.h.b16 %v1274
    %v1418 = vunpack.c.l.b16 %v1275
    %v1419 = vunpack.c.h.b16 %v1275
    %v1420 = vunpack.c.l.b16 %v1276
    %v1421 = vunpack.c.h.b16 %v1276
    %v1422 = vunpack.c.l.b16 %v1277
    %v1423 = vunpack.c.h.b16 %v1277
    %v1424 = vunpack.c.l.b16 %v1278
    %v1425 = vunpack.c.h.b16 %v1278
    %v1426 = vunpack.c.l.b16 %v1279
    %v1427 = vunpack.c.h.b16 %v1279
    %v1428 = vunpack.c.l.b16 %v1280
    %v1429 = vunpack.c.h.b16 %v1280
    %v1430 = vunpack.c.l.b16 %v1281
    %v1431 = vunpack.c.h.b16 %v1281
    %v1432 = vunpack.c.l.b16 %v1282
    %v1433 = vunpack.c.h.b16 %v1282
    %v1434 = vunpack.c.l.b16 %v1283
    %v1435 = vunpack.c.h.b16 %v1283
    %v1436 = vunpack.c.l.b16 %v1284
    %v1437 = vunpack.c.h.b16 %v1284
    %v1438 = vunpack.c.l.b16 %v1285
    %v1439 = vunpack.c.h.b16 %v1285
    %v1440 = vunpack.c.l.b16 %v1286
    %v1441 = vunpack.c.h.b16 %v1286
    %v1442 = vunpack.c.l.b16 %v1287
    %v1443 = vunpack.c.h.b16 %v1287
    %v1444 = vunpack.c.l.b16 %v1288
    %v1445 = vunpack.c.h.b16 %v1288
    %v1446 = vunpack.c.l.b16 %v1289
    %v1447 = vunpack.c.h.b16 %v1289
    %v1448 = vunpack.c.l.b16 %v1290
    %v1449 = vunpack.c.h.b16 %v1290
    %v1450 = vunpack.c.l.b16 %v1291
    %v1451 = vunpack.c.h.b16 %v1291
    %v1452 = vunpack.c.l.b16 %v1292
    %v1453 = vunpack.c.h.b16 %v1292
    %v1454 = vunpack.c.l.b16 %v1293
    %v1455 = vunpack.c.h.b16 %v1293
    %v1456 = vunpack.c.l.b16 %v1294
    %v1457 = vunpack.c.h.b16 %v1294
    %v1458 = vunpack.c.l.b16 %v1295
    %v1459 = vunpack.c.h.b16 %v1295
    %v1460 = vunpack.c.l.b16 %v1296
    %v1461 = vunpack.c.h.b16 %v1296
    %v1462 = vunpack.c.l.b16 %v1297
    %v1463 = vunpack.c.h.b16 %v1297
    %v1464 = vunpack.c.l.b16 %v1298
    %v1465 = vunpack.c.h.b16 %v1298
    %v1466 = vunpack.c.l.b16 %v1299
    %v1467 = vunpack.c.h.b16 %v1299
    %v1468 = vunpack.c.l.b16 %v1300
    %v1469 = vunpack.c.h.b16 %v1300
    %v1470 = vunpack.c.l.b16 %v1301
    %v1471 = vunpack.c.h.b16 %v1301
    %v1472 = vunpack.c.l.b16 %v1302
    %v1473 = vunpack.c.h.b16 %v1302
    %v1474 = vunpack.c.l.b16 %v1303
    %v1475 = vunpack.c.h.b16 %v1303
    %v1476 = vunpack.c.l.b16 %v1304
    %v1477 = vunpack.c.h.b16 %v1304
    %v1478 = vunpack.c.l.b16 %v1305
    %v1479 = vunpack.c.h.b16 %v1305
    %v1480 = vunpack.c.l.b16 %v1306
    %v1481 = vunpack.c.h.b16 %v1306
    %v1482 = vunpack.c.l.b16 %v1307
    %v1483 = vunpack.c.h.b16 %v1307
    %v1484 = vunpack.c.l.b16 %v1308
    %v1485 = vunpack.c.h.b16 %v1308
    %v1486 = vunpack.c.l.b16 %v1309
    %v1487 = vunpack.c.h.b16 %v1309
    %v1488 = vunpack.c.l.b16 %v1310
    %v1489 = vunpack.c.h.b16 %v1310
    %v1490 = vunpack.c.l.b16 %v1311
    %v1491 = vunpack.c.h.b16 %v1311
    %v1492 = vunpack.c.l.b16 %v1312
    %v1493 = vunpack.c.h.b16 %v1312
    %v1494 = vunpack.c.l.b16 %v1313
    %v1495 = vunpack.c.h.b16 %v1313
    %v1496 = vunpack.c.l.b16 %v1314
    %v1497 = vunpack.c.h.b16 %v1314
    %v1498 = vunpack.c.l.b16 %v1315
    %v1499 = vunpack.c.h.b16 %v1315
    %v1500 = vunpack.c.l.b16 %v1316
    %v1501 = vunpack.c.h.b16 %v1316
    %v1502 = vunpack.c.l.b16 %v1317
    %v1503 = vunpack.c.h.b16 %v1317
    %v1504 = vunpack.c.l.b16 %v1318
    %v1505 = vunpack.c.h.b16 %v1318
    %v1506 = vunpack.c.l.b16 %v1319
    %v1507 = vunpack.c.h.b16 %v1319
    %v1508 = vunpack.c.l.b16 %v1320
    %v1509 = vunpack.c.h.b16 %v1320
    %v1510 = vunpack.c.l.b16 %v1321
    %v1511 = vunpack.c.h.b16 %v1321
    %v1512 = vunpack.c.l.b16 %v1322
    %v1513 = vunpack.c.h.b16 %v1322
    %v1514 = vunpack.c.l.b16 %v1323
    %v1515 = vunpack.c.h.b16 %v1323
    %v1516 = vpack.c.b16 %v1390, %v1388
    %v1517 = vpack.c.b16 %v1391, %v1389
    %v1518 = vpack.c.b16 %v1394, %v1392
    %v1519 = vpack.c.b16 %v1395, %v1393
    %v1520 = vpack.c.b16 %v1398, %v1396
    %v1521 = vpack.c.b16 %v1399, %v1397
    %v1522 = vpack.c.b16 %v1402, %v1400
    %v1523 = vpack.c.b16 %v1403, %v1401
    %v1524 = vpack.c.b16 %v1406, %v1404
    %v1525 = vpack.c.b16 %v1407, %v1405
    %v1526 = vpack.c.b16 %v1410, %v1408
    %v1527 = vpack.c.b16 %v1411, %v1409
    %v1528 = vpack.c.b16 %v1414, %v1412
    %v1529 = vpack.c.b16 %v1415, %v1413
    %v1530 = vpack.c.b16 %v1418, %v1416
    %v1531 = vpack.c.b16 %v1419, %v1417
    %v1532 = vpack.c.b16 %v1422, %v1420
    %v1533 = vpack.c.b16 %v1423, %v1421
    %v1534 = vpack.c.b16 %v1426, %v1424
    %v1535 = vpack.c.b16 %v1427, %v1425
    %v1536 = vpack.c.b16 %v1430, %v1428
    %v1537 = vpack.c.b16 %v1431, %v1429
    %v1538 = vpack.c.b16 %v1434, %v1432
    %v1539 = vpack.c.b16 %v1435, %v1433
    %v1540 = vpack.c.b16 %v1438, %v1436
    %v1541 = vpack.c.b16 %v1439, %v1437
    %v1542 = vpack.c.b16 %v1442, %v1440
    %v1543 = vpack.c.b16 %v1443, %v1441
    %v1544 = vpack.c.b16 %v1446, %v1444
    %v1545 = vpack.c.b16 %v1447, %v1445
    %v1546 = vpack.c.b16 %v1450, %v1448
    %v1547 = vpack.c.b16 %v1451, %v1449
    %v1548 = vpack.c.b16 %v1454, %v1452
    %v1549 = vpack.c.b16 %v1455, %v1453
    %v1550 = vpack.c.b16 %v1458, %v1456
    %v1551 = vpack.c.b16 %v1459, %v1457
    %v1552 = vpack.c.b16 %v1462, %v1460
    %v1553 = vpack.c.b16 %v1463, %v1461
    %v1554 = vpack.c.b16 %v1466, %v1464
    %v1555 = vpack.c.b16 %v1467, %v1465
    %v1556 = vpack.c.b16 %v1470, %v1468
    %v1557 = vpack.c.b16 %v1471, %v1469
    %v1558 = vpack.c.b16 %v1474, %v1472
    %v1559 = vpack.c.b16 %v1475, %v1473
    %v1560 = vpack.c.b16 %v1478, %v1476
    %v1561 = vpack.c.b16 %v1479, %v1477
    %v1562 = vpack.c.b16 %v1482, %v1480
    %v1563 = vpack.c.b16 %v1483, %v1481
    %v1564 = vpack.c.b16 %v1486, %v1484
    %v1565 = vpack.c.b16 %v1487, %v1485
    %v1566 = vpack.c.b16 %v1490, %v1488
    %v1567 = vpack.c.b16 %v1491, %v1489
    %v1568 = vpack.c.b16 %v1494, %v1492
    %v1569 = vpack.c.b16 %v1495, %v1493
    %v1570 = vpack.c.b16 %v1498, %v1496
    %v1571 = vpack.c.b16 %v1499, %v1497
    %v1572 = vpack.c.b16 %v1502, %v1500
    %v1573 = vpack.c.b16 %v1503, %v1501
    %v1574 = vpack.c.b16 %v1506, %v1504
    %v1575 = vpack.c.b16 %v1507, %v1505
    %v1576 = vpack.c.b16 %v1510, %v1508
    %v1577 = vpack.c.b16 %v1511, %v1509
    %v1578 = vpack.c.b16 %v1514, %v1512
    %v1579 = vpack.c.b16 %v1515, %v1513
    %1644 = vmatprep.subr.bf16.mxu0 %v1531
    %1645 = vmatpush1.bf16.msra.mxu0 %v1530
    %1646 = vmatprep.subr.bf16.mxu0 %v1529
    %1647 = vmatpush1.bf16.msra.mxu0 %v1528
    %1648 = vmatprep.subr.bf16.mxu0 %v1527
    %1649 = vmatpush1.bf16.msra.mxu0 %v1526
    %1650 = vmatprep.subr.bf16.mxu0 %v1525
    %1651 = vmatpush1.bf16.msra.mxu0 %v1524
    %1652 = vmatprep.subr.bf16.mxu0 %v1523
    %1653 = vmatpush1.bf16.msra.mxu0 %v1522
    %1654 = vmatprep.subr.bf16.mxu0 %v1521
    %1655 = vmatpush1.bf16.msra.mxu0 %v1520
    %1656 = vmatprep.subr.bf16.mxu0 %v1519
    %1657 = vmatpush1.bf16.msra.mxu0 %v1518
    %1658 = vmatprep.subr.bf16.mxu0 %v1517
    %1659 = vmatpush1.bf16.msra.mxu0 %v1516
    %1660 = vmatprep.subr.bf16.mxu0 %v1547
    %1661 = vmatpush2.bf16.msra.mxu0 %v1546
    %1662 = vmatprep.subr.bf16.mxu0 %v1545
    %1663 = vmatpush2.bf16.msra.mxu0 %v1544
    %1664 = vmatprep.subr.bf16.mxu0 %v1543
    %1665 = vmatpush2.bf16.msra.mxu0 %v1542
    %1666 = vmatprep.subr.bf16.mxu0 %v1541
    %1667 = vmatpush2.bf16.msra.mxu0 %v1540
    %1668 = vmatprep.subr.bf16.mxu0 %v1539
    %1669 = vmatpush2.bf16.msra.mxu0 %v1538
    %1670 = vmatprep.subr.bf16.mxu0 %v1537
    %1671 = vmatpush2.bf16.msra.mxu0 %v1536
    %1672 = vmatprep.subr.bf16.mxu0 %v1535
    %1673 = vmatpush2.bf16.msra.mxu0 %v1534
    %1674 = vmatprep.subr.bf16.mxu0 %v1533
    %1675 = vmatpush2.bf16.msra.mxu0 %v1532
    %1676 = vmatprep.mubr.bf16.mxu0 %v1257
    %1677 = vmatmul.mubr.bf16.gmra.mxu0 %v1256
    %v1678 = vpop.f32.mrf.mxu0
    %v1679 = vadd.f32 0.0, %v1678
    %v1680 = vpop.f32.mrf.mxu0
    %v1681 = vadd.f32 0.0, %v1680
    %v1682 = vpop.f32.mrf.mxu0
    %v1683 = vpop.f32.mrf.mxu0
    %1684 = vdwg.mxu0
    %1685 = vmatprep.subr.bf16.mxu0 %v1563
    %1686 = vmatpush1.bf16.msra.mxu0 %v1562
    %1687 = vmatprep.subr.bf16.mxu0 %v1561
    %1688 = vmatpush1.bf16.msra.mxu0 %v1560
    %1689 = vmatprep.subr.bf16.mxu0 %v1559
    %1690 = vmatpush1.bf16.msra.mxu0 %v1558
    %1691 = vmatprep.subr.bf16.mxu0 %v1557
    %1692 = vmatpush1.bf16.msra.mxu0 %v1556
    %1693 = vmatprep.subr.bf16.mxu0 %v1555
    %1694 = vmatpush1.bf16.msra.mxu0 %v1554
    %1695 = vmatprep.subr.bf16.mxu0 %v1553
    %1696 = vmatpush1.bf16.msra.mxu0 %v1552
    %1697 = vmatprep.subr.bf16.mxu0 %v1551
    %1698 = vmatpush1.bf16.msra.mxu0 %v1550
    %1699 = vmatprep.subr.bf16.mxu0 %v1549
    %1700 = vmatpush1.bf16.msra.mxu0 %v1548
    %1701 = vmatprep.subr.bf16.mxu0 %v1579
    %1702 = vmatpush2.bf16.msra.mxu0 %v1578
    %1703 = vmatprep.subr.bf16.mxu0 %v1577
    %1704 = vmatpush2.bf16.msra.mxu0 %v1576
    %1705 = vmatprep.subr.bf16.mxu0 %v1575
    %1706 = vmatpush2.bf16.msra.mxu0 %v1574
    %1707 = vmatprep.subr.bf16.mxu0 %v1573
    %1708 = vmatpush2.bf16.msra.mxu0 %v1572
    %1709 = vmatprep.subr.bf16.mxu0 %v1571
    %1710 = vmatpush2.bf16.msra.mxu0 %v1570
    %1711 = vmatprep.subr.bf16.mxu0 %v1569
    %1712 = vmatpush2.bf16.msra.mxu0 %v1568
    %1713 = vmatprep.subr.bf16.mxu0 %v1567
    %1714 = vmatpush2.bf16.msra.mxu0 %v1566
    %1715 = vmatprep.subr.bf16.mxu0 %v1565
    %1716 = vmatpush2.bf16.msra.mxu0 %v1564
    %1717 = vmatprep.mubr.bf16.mxu0 %v1259
    %1718 = vmatmul.mubr.bf16.gmra.mxu0 %v1258
    %v1719 = vpop.f32.mrf.mxu0
    %v1720 = vadd.f32 %v1679, %v1719
    %v1721 = vpop.f32.mrf.mxu0
    %v1722 = vadd.f32 %v1681, %v1721
    %v1723 = vpop.f32.mrf.mxu0
    %v1724 = vpop.f32.mrf.mxu0
    %1725 = vdwg.mxu0
    %v1726 = vmax.f32 %v1720, 0.0
    %v1727 = vmax.f32 %v1722, 0.0
    %v1728 = vpack.c.bf16 %v1726, %v1726
    %v1729 = vpack.c.bf16 %v1727, %v1727
    %v1730 = vld [vmem:[%s3] sm:$0xf]
    %v1731 = vld [vmem:[%s3 + $0x4] sm:$0xf]
    %v1732 = vld [vmem:[%s3 + $0x8] sm:$0xf]
    %v1733 = vld [vmem:[%s3 + $0xc] sm:$0xf]
    %v1734 = vld [vmem:[%s3 + $0x10] sm:$0xf]
    %v1735 = vld [vmem:[%s3 + $0x14] sm:$0xf]
    %v1736 = vld [vmem:[%s3 + $0x18] sm:$0xf]
    %v1737 = vld [vmem:[%s3 + $0x1c] sm:$0xf]
    %v1738 = vld [vmem:[%s3 + $0x20] sm:$0xf]
    %v1739 = vld [vmem:[%s3 + $0x24] sm:$0xf]
    %v1740 = vld [vmem:[%s3 + $0x28] sm:$0xf]
    %v1741 = vld [vmem:[%s3 + $0x2c] sm:$0xf]
    %v1742 = vld [vmem:[%s3 + $0x30] sm:$0xf]
    %v1743 = vld [vmem:[%s3 + $0x34] sm:$0xf]
    %v1744 = vld [vmem:[%s3 + $0x38] sm:$0xf]
    %v1745 = vld [vmem:[%s3 + $0x3c] sm:$0xf]
    %v1746 = vld [vmem:[%s3 + $0x40] sm:$0xf]
    %v1747 = vld [vmem:[%s3 + $0x44] sm:$0xf]
    %v1748 = vld [vmem:[%s3 + $0x48] sm:$0xf]
    %v1749 = vld [vmem:[%s3 + $0x4c] sm:$0xf]
    %v1750 = vld [vmem:[%s3 + $0x50] sm:$0xf]
    %v1751 = vld [vmem:[%s3 + $0x54] sm:$0xf]
    %v1752 = vld [vmem:[%s3 + $0x58] sm:$0xf]
    %v1753 = vld [vmem:[%s3 + $0x5c] sm:$0xf]
    %v1754 = vld [vmem:[%s3 + $0x60] sm:$0xf]
    %v1755 = vld [vmem:[%s3 + $0x64] sm:$0xf]
    %v1756 = vld [vmem:[%s3 + $0x68] sm:$0xf]
    %v1757 = vld [vmem:[%s3 + $0x6c] sm:$0xf]
    %v1758 = vld [vmem:[%s3 + $0x70] sm:$0xf]
    %v1759 = vld [vmem:[%s3 + $0x74] sm:$0xf]
    %v1760 = vld [vmem:[%s3 + $0x78] sm:$0xf]
    %v1761 = vld [vmem:[%s3 + $0x7c] sm:$0xf]
    %v1794 = vunpack.c.l.b16 %v1730
    %v1795 = vunpack.c.l.b16 %v1731
    %v1796 = vunpack.c.l.b16 %v1732
    %v1797 = vunpack.c.l.b16 %v1733
    %v1798 = vunpack.c.l.b16 %v1734
    %v1799 = vunpack.c.l.b16 %v1735
    %v1800 = vunpack.c.l.b16 %v1736
    %v1801 = vunpack.c.l.b16 %v1737
    %v1802 = vunpack.c.l.b16 %v1738
    %v1803 = vunpack.c.l.b16 %v1739
    %v1804 = vunpack.c.l.b16 %v1740
    %v1805 = vunpack.c.l.b16 %v1741
    %v1806 = vunpack.c.l.b16 %v1742
    %v1807 = vunpack.c.l.b16 %v1743
    %v1808 = vunpack.c.l.b16 %v1744
    %v1809 = vunpack.c.l.b16 %v1745
    %v1810 = vunpack.c.l.b16 %v1746
    %v1811 = vunpack.c.l.b16 %v1747
    %v1812 = vunpack.c.l.b16 %v1748
    %v1813 = vunpack.c.l.b16 %v1749
    %v1814 = vunpack.c.l.b16 %v1750
    %v1815 = vunpack.c.l.b16 %v1751
    %v1816 = vunpack.c.l.b16 %v1752
    %v1817 = vunpack.c.l.b16 %v1753
    %v1818 = vunpack.c.l.b16 %v1754
    %v1819 = vunpack.c.l.b16 %v1755
    %v1820 = vunpack.c.l.b16 %v1756
    %v1821 = vunpack.c.l.b16 %v1757
    %v1822 = vunpack.c.l.b16 %v1758
    %v1823 = vunpack.c.l.b16 %v1759
    %v1824 = vunpack.c.l.b16 %v1760
    %v1825 = vunpack.c.l.b16 %v1761
    %v1826 = vpack.c.b16 %v1795, %v1794
    %v1827 = vpack.c.b16 %v1797, %v1796
    %v1828 = vpack.c.b16 %v1799, %v1798
    %v1829 = vpack.c.b16 %v1801, %v1800
    %v1830 = vpack.c.b16 %v1803, %v1802
    %v1831 = vpack.c.b16 %v1805, %v1804
    %v1832 = vpack.c.b16 %v1807, %v1806
    %v1833 = vpack.c.b16 %v1809, %v1808
    %v1834 = vpack.c.b16 %v1811, %v1810
    %v1835 = vpack.c.b16 %v1813, %v1812
    %v1836 = vpack.c.b16 %v1815, %v1814
    %v1837 = vpack.c.b16 %v1817, %v1816
    %v1838 = vpack.c.b16 %v1819, %v1818
    %v1839 = vpack.c.b16 %v1821, %v1820
    %v1840 = vpack.c.b16 %v1823, %v1822
    %v1841 = vpack.c.b16 %v1825, %v1824
    %1858 = vmatprep.subr.bf16.mxu0 0
    %1859 = vmatpush1.bf16.msra.mxu0 %v1833
    %1860 = vmatprep.subr.bf16.mxu0 0
    %1861 = vmatpush1.bf16.msra.mxu0 %v1832
    %1862 = vmatprep.subr.bf16.mxu0 0
    %1863 = vmatpush1.bf16.msra.mxu0 %v1831
    %1864 = vmatprep.subr.bf16.mxu0 0
    %1865 = vmatpush1.bf16.msra.mxu0 %v1830
    %1866 = vmatprep.subr.bf16.mxu0 0
    %1867 = vmatpush1.bf16.msra.mxu0 %v1829
    %1868 = vmatprep.subr.bf16.mxu0 0
    %1869 = vmatpush1.bf16.msra.mxu0 %v1828
    %1870 = vmatprep.subr.bf16.mxu0 0
    %1871 = vmatpush1.bf16.msra.mxu0 %v1827
    %1872 = vmatprep.subr.bf16.mxu0 0
    %1873 = vmatpush1.bf16.msra.mxu0 %v1826
    %1874 = vmatprep.subr.bf16.mxu0 0
    %1875 = vmatpush2.bf16.msra.mxu0 %v1841
    %1876 = vmatprep.subr.bf16.mxu0 0
    %1877 = vmatpush2.bf16.msra.mxu0 %v1840
    %1878 = vmatprep.subr.bf16.mxu0 0
    %1879 = vmatpush2.bf16.msra.mxu0 %v1839
    %1880 = vmatprep.subr.bf16.mxu0 0
    %1881 = vmatpush2.bf16.msra.mxu0 %v1838
    %1882 = vmatprep.subr.bf16.mxu0 0
    %1883 = vmatpush2.bf16.msra.mxu0 %v1837
    %1884 = vmatprep.subr.bf16.mxu0 0
    %1885 = vmatpush2.bf16.msra.mxu0 %v1836
    %1886 = vmatprep.subr.bf16.mxu0 0
    %1887 = vmatpush2.bf16.msra.mxu0 %v1835
    %1888 = vmatprep.subr.bf16.mxu0 0
    %1889 = vmatpush2.bf16.msra.mxu0 %v1834
    %1890 = vmatprep.mubr.bf16.mxu0 %v1729
    %1891 = vmatmul.mubr.bf16.gmra.mxu0 %v1728
    %v1892 = vpop.f32.mrf.mxu0
    %v1893 = vadd.f32 0.0, %v1892
    %v1894 = vpop.f32.mrf.mxu0
    %v1895 = vpop.f32.mrf.mxu0
    %v1896 = vpop.f32.mrf.mxu0
    %1897 = vdwg.mxu0
    %v1898 = vmax.f32 %v1893, 0.0
    %v1899 = vpack.c.bf16 %v1898, %v1898
    %v1900 = vld [vmem:[%s4] sm:$0xf]
    %v1901 = vld [vmem:[%s4 + $0x4] sm:$0xf]
    %v1902 = vld [vmem:[%s4 + $0x8] sm:$0xf]
    %v1903 = vld [vmem:[%s4 + $0xc] sm:$0xf]
    %v1904 = vld [vmem:[%s4 + $0x10] sm:$0xf]
    %v1905 = vld [vmem:[%s4 + $0x14] sm:$0xf]
    %v1906 = vld [vmem:[%s4 + $0x18] sm:$0xf]
    %v1907 = vld [vmem:[%s4 + $0x1c] sm:$0xf]
    %v1908 = vld [vmem:[%s4 + $0x20] sm:$0xf]
    %v1909 = vld [vmem:[%s4 + $0x24] sm:$0xf]
    %v1910 = vld [vmem:[%s4 + $0x28] sm:$0xf]
    %v1911 = vld [vmem:[%s4 + $0x2c] sm:$0xf]
    %v1912 = vld [vmem:[%s4 + $0x30] sm:$0xf]
    %v1913 = vld [vmem:[%s4 + $0x34] sm:$0xf]
    %v1914 = vld [vmem:[%s4 + $0x38] sm:$0xf]
    %v1915 = vld [vmem:[%s4 + $0x3c] sm:$0xf]
    %v1932 = vunpack.c.l.b16 %v1900
    %v1933 = vunpack.c.l.b16 %v1901
    %v1934 = vunpack.c.l.b16 %v1902
    %v1935 = vunpack.c.l.b16 %v1903
    %v1936 = vunpack.c.l.b16 %v1904
    %v1937 = vunpack.c.l.b16 %v1905
    %v1938 = vunpack.c.l.b16 %v1906
    %v1939 = vunpack.c.l.b16 %v1907
    %v1940 = vunpack.c.l.b16 %v1908
    %v1941 = vunpack.c.l.b16 %v1909
    %v1942 = vunpack.c.l.b16 %v1910
    %v1943 = vunpack.c.l.b16 %v1911
    %v1944 = vunpack.c.l.b16 %v1912
    %v1945 = vunpack.c.l.b16 %v1913
    %v1946 = vunpack.c.l.b16 %v1914
    %v1947 = vunpack.c.l.b16 %v1915
    %v1948 = vpack.c.b16 %v1933, %v1932
    %v1949 = vpack.c.b16 %v1935, %v1934
    %v1950 = vpack.c.b16 %v1937, %v1936
    %v1951 = vpack.c.b16 %v1939, %v1938
    %v1952 = vpack.c.b16 %v1941, %v1940
    %v1953 = vpack.c.b16 %v1943, %v1942
    %v1954 = vpack.c.b16 %v1945, %v1944
    %v1955 = vpack.c.b16 %v1947, %v1946
    %1964 = vmatprep.subr.bf16.mxu0 0
    %1965 = vmatpush1.bf16.msra.mxu0 %v1955
    %1966 = vmatprep.subr.bf16.mxu0 0
    %1967 = vmatpush1.bf16.msra.mxu0 %v1954
    %1968 = vmatprep.subr.bf16.mxu0 0
    %1969 = vmatpush1.bf16.msra.mxu0 %v1953
    %1970 = vmatprep.subr.bf16.mxu0 0
    %1971 = vmatpush1.bf16.msra.mxu0 %v1952
    %1972 = vmatprep.subr.bf16.mxu0 0
    %1973 = vmatpush1.bf16.msra.mxu0 %v1951
    %1974 = vmatprep.subr.bf16.mxu0 0
    %1975 = vmatpush1.bf16.msra.mxu0 %v1950
    %1976 = vmatprep.subr.bf16.mxu0 0
    %1977 = vmatpush1.bf16.msra.mxu0 %v1949
    %1978 = vmatprep.subr.bf16.mxu0 0
    %1979 = vmatpush1.bf16.msra.mxu0 %v1948
    %1980 = vmatprep.subr.bf16.mxu0 0
    %1981 = vmatpush2.bf16.msra.mxu0 0
    %1982 = vmatprep.subr.bf16.mxu0 0
    %1983 = vmatpush2.bf16.msra.mxu0 0
    %1984 = vmatprep.subr.bf16.mxu0 0
    %1985 = vmatpush2.bf16.msra.mxu0 0
    %1986 = vmatprep.subr.bf16.mxu0 0
    %1987 = vmatpush2.bf16.msra.mxu0 0
    %1988 = vmatprep.subr.bf16.mxu0 0
    %1989 = vmatpush2.bf16.msra.mxu0 0
    %1990 = vmatprep.subr.bf16.mxu0 0
    %1991 = vmatpush2.bf16.msra.mxu0 0
    %1992 = vmatprep.subr.bf16.mxu0 0
    %1993 = vmatpush2.bf16.msra.mxu0 0
    %1994 = vmatprep.subr.bf16.mxu0 0
    %1995 = vmatpush2.bf16.msra.mxu0 0
    %1996 = vmatprep.mubr.bf16.mxu0 0
    %1997 = vmatmul.mubr.bf16.gmra.mxu0 %v1899
    %v1998 = vpop.f32.mrf.mxu0
    %v1999 = vadd.f32 0.0, %v1998
    %v2000 = vpop.f32.mrf.mxu0
    %v2001 = vpop.f32.mrf.mxu0
    %v2002 = vpop.f32.mrf.mxu0
    %2003 = vdwg.mxu0
    %v2004 = vmax.f32 %v1999, 0.0
    %v2005 = vpack.c.bf16 %v2004, %v2004
    %v2006 = vld [vmem:[%s5] sm:$0xf]
    %v2007 = vld [vmem:[%s5 + $0x4] sm:$0xf]
    %v2008 = vld [vmem:[%s5 + $0x8] sm:$0xf]
    %v2009 = vld [vmem:[%s5 + $0xc] sm:$0xf]
    %v2010 = vld [vmem:[%s5 + $0x10] sm:$0xf]
    %v2011 = vld [vmem:[%s5 + $0x14] sm:$0xf]
    %v2012 = vld [vmem:[%s5 + $0x18] sm:$0xf]
    %v2013 = vld [vmem:[%s5 + $0x1c] sm:$0xf]
    %v2022 = vunpack.c.l.b16 %v2006
    %v2023 = vunpack.c.l.b16 %v2007
    %v2024 = vunpack.c.l.b16 %v2008
    %v2025 = vunpack.c.l.b16 %v2009
    %v2026 = vunpack.c.l.b16 %v2010
    %v2027 = vunpack.c.l.b16 %v2011
    %v2028 = vunpack.c.l.b16 %v2012
    %v2029 = vunpack.c.l.b16 %v2013
    %v2030 = vpack.c.b16 %v2023, %v2022
    %v2031 = vpack.c.b16 %v2025, %v2024
    %v2032 = vpack.c.b16 %v2027, %v2026
    %v2033 = vpack.c.b16 %v2029, %v2028
    %vm2038 = vcmask 523264
    %v2040 = vsel %vm2038, %v2005, 0
    %2042 = vmatprep.subr.bf16.mxu0 0
    %2043 = vmatpush1.bf16.msra.mxu0 0
    %2044 = vmatprep.subr.bf16.mxu0 0
    %2045 = vmatpush1.bf16.msra.mxu0 0
    %2046 = vmatprep.subr.bf16.mxu0 0
    %2047 = vmatpush1.bf16.msra.mxu0 0
    %2048 = vmatprep.subr.bf16.mxu0 0
    %2049 = vmatpush1.bf16.msra.mxu0 0
    %2050 = vmatprep.subr.bf16.mxu0 0
    %2051 = vmatpush1.bf16.msra.mxu0 %v2033
    %2052 = vmatprep.subr.bf16.mxu0 0
    %2053 = vmatpush1.bf16.msra.mxu0 %v2032
    %2054 = vmatprep.subr.bf16.mxu0 0
    %2055 = vmatpush1.bf16.msra.mxu0 %v2031
    %2056 = vmatprep.subr.bf16.mxu0 0
    %2057 = vmatpush1.bf16.msra.mxu0 %v2030
    %2058 = vmatprep.subr.bf16.mxu0 0
    %2059 = vmatpush2.bf16.msra.mxu0 0
    %2060 = vmatprep.subr.bf16.mxu0 0
    %2061 = vmatpush2.bf16.msra.mxu0 0
    %2062 = vmatprep.subr.bf16.mxu0 0
    %2063 = vmatpush2.bf16.msra.mxu0 0
    %2064 = vmatprep.subr.bf16.mxu0 0
    %2065 = vmatpush2.bf16.msra.mxu0 0
    %2066 = vmatprep.subr.bf16.mxu0 0
    %2067 = vmatpush2.bf16.msra.mxu0 0
    %2068 = vmatprep.subr.bf16.mxu0 0
    %2069 = vmatpush2.bf16.msra.mxu0 0
    %2070 = vmatprep.subr.bf16.mxu0 0
    %2071 = vmatpush2.bf16.msra.mxu0 0
    %2072 = vmatprep.subr.bf16.mxu0 0
    %2073 = vmatpush2.bf16.msra.mxu0 0
    %2074 = vmatprep.mubr.bf16.mxu0 0
    %2075 = vmatmul.mubr.bf16.gmra.mxu0 %v2040
    %v2076 = vpop.f32.mrf.mxu0
    %v2077 = vadd.f32 0.0, %v2076
    %v2078 = vpop.f32.mrf.mxu0
    %v2079 = vpop.f32.mrf.mxu0
    %v2080 = vpop.f32.mrf.mxu0
    %2081 = vdwg.mxu0
    %v2082 = vmax.f32 %v2077, 0.0
    %2083 = vst [vmem:[#allocation2] sm:$0xff] %v2082
    // Predicated region
    $region26: #{svdd_net.1} parent=1 // pred_check
      _
    $region27: #{svdd_net.1} parent=1 // pred_check_branch
      %2085 = sbr.rel (0) target = $region29
    $region28: #{svdd_net.1} parent=1 // pred_region
      %s2087 = ssub.s32 128, 128
      %2088 = vsyncadd [#allocation3], %s2087
      %s2090 = sshll.u32 [#allocation2], 4
      %s2091 = int_to_ptr.vmem [resolvable:$true] %s2090
      %2093 = dma.vmem_to_hbm [thread:$0]  %s2091, 128, %s6, [#allocation3]
    $region29: #{svdd_net.1} parent=1 // pred_fallthru
      _
    // Predicated region
    $region30: #{svdd_net.1} parent=1 // pred_check
      _
    $region31: #{svdd_net.1} parent=1 // pred_check_branch
      %2095 = sbr.rel (0) target = $region33
    $region32: #{svdd_net.1} parent=1 // pred_region
      %2096 = dma.done [#allocation3], 128
    $region33: #{svdd_net.1} parent=1 // pred_fallthru
      _
    %2097 = vsyncpa [#allocation3], 1

</llo_original>
